<compile_context>
chip_gen: v7x
topology: tpu7x:2x2x1
jax: 0.10.0
libtpu: 0.0.40
codegen_flags: <defaults>
</compile_context>

<pallas_src>
import functools

import jax
import jax.numpy as jnp
from jax import lax
from jax.experimental import pallas as pl
from jax.experimental.pallas import tpu as pltpu


def _residual_kernel(*refs, H, W, Cin, Cout, has_up):
    # has_up=True : (x_ref, w1_ref, w2c_ref, bias_ref, out_ref)
    # has_up=False: (x_ref, w1_ref, w2c_ref, out_ref)
    if has_up:
        x_ref, w1_ref, w2c_ref, bias_ref, out_ref = refs
    else:
        x_ref, w1_ref, w2c_ref, out_ref = refs
        bias_ref = None

    x = x_ref[0]                                   # (Cin, H, W)  original input
    x_relu = jnp.maximum(x, 0.0)                   # relu(x) for the conv branch

    # ---- zero-pad relu(x) spatially in-kernel (relu(pad(x)) == pad(relu(x))) ----
    zrow = jnp.zeros((Cin, 1, W), jnp.float32)
    xp = jnp.concatenate([zrow, x_relu, zrow], axis=1)        # (Cin, H+2, W)
    zcol = jnp.zeros((Cin, H + 2, 1), jnp.float32)
    xp = jnp.concatenate([zcol, xp, zcol], axis=2)            # (Cin, H+2, W+2)

    # ---- cnn1 (3x3, pad 1, no bias) as a single matmul via im2col ----
    cols = [xp[:, ki:ki + H, kj:kj + W].reshape(Cin, H * W)
            for ki in range(3) for kj in range(3)]
    im2col = jnp.concatenate(cols, axis=0)                    # (9*Cin, H*W)

    y1 = jnp.dot(w1_ref[...], im2col,
                 preferred_element_type=jnp.float32)           # (Cout, H*W)
    y1 = jnp.maximum(y1, 0.0)                                  # relu(cnn1(.))

    x_flat = x.reshape(Cin, H * W)                             # residual branch (no relu)

    if has_up:
        # fused cnn2 + channel_up:  [w2^T | wup^T] @ [relu(y1) ; x]  + bias
        m2 = jnp.concatenate([y1, x_flat], axis=0)             # (Cout+Cin, H*W)
        y2 = jnp.dot(w2c_ref[...], m2,
                     preferred_element_type=jnp.float32) + bias_ref[...]
    else:
        # Cin == Cout: plain identity residual
        y2 = jnp.dot(w2c_ref[...], y1,
                     preferred_element_type=jnp.float32) + x_flat

    out_ref[0] = y2.astype(out_ref.dtype)                      # (Cout, H*W) lane-dense


def residual_forward(x_nchw, w1_hwio, w2_io, wup_io=None, bup=None):
    """Pallas implementation of Residual.forward. x_nchw: (B, Cin, H, W) -> (B, Cout, H, W)."""
    B, Cin, H, W = x_nchw.shape
    Cout = w1_hwio.shape[-1]
    has_up = Cin != Cout

    x = x_nchw.astype(jnp.float32)
    # (Cout, 9*Cin); column index = (ki*3 + kj)*Cin + c, matching the im2col row order.
    w1t = jnp.transpose(w1_hwio, (3, 0, 1, 2)).reshape(Cout, 9 * Cin).astype(jnp.float32)

    in_specs = [
        pl.BlockSpec((1, Cin, H, W), lambda b: (b, 0, 0, 0)),
        pl.BlockSpec((Cout, 9 * Cin), lambda b: (0, 0)),
    ]
    if has_up:
        w2c = jnp.concatenate([w2_io.T, wup_io.T], axis=1).astype(jnp.float32)  # (Cout, Cout+Cin)
        bias = bup.reshape(Cout, 1).astype(jnp.float32)
        inputs = (x, w1t, w2c, bias)
        in_specs += [
            pl.BlockSpec((Cout, Cout + Cin), lambda b: (0, 0)),
            pl.BlockSpec((Cout, 1), lambda b: (0, 0)),
        ]
    else:
        w2c = w2_io.T.astype(jnp.float32)                                        # (Cout, Cout)
        inputs = (x, w1t, w2c)
        in_specs += [pl.BlockSpec((Cout, Cout), lambda b: (0, 0))]

    kernel = functools.partial(_residual_kernel, H=H, W=W, Cin=Cin, Cout=Cout,
                               has_up=has_up)

    out = pl.pallas_call(
        kernel,
        out_shape=jax.ShapeDtypeStruct((B, Cout, H * W), jnp.float32),
        grid_spec=pltpu.PrefetchScalarGridSpec(
            num_scalar_prefetch=0,
            grid=(B,),
            in_specs=in_specs,
            out_specs=pl.BlockSpec((1, Cout, H * W), lambda b: (b, 0, 0)),
        ),
        compiler_params=pltpu.CompilerParams(
            dimension_semantics=("parallel",)),
    )(*inputs)

    # row-major (B, Cout, H*W) -> (B, Cout, H, W) is a free metadata reshape.
    return out.reshape(B, Cout, H, W)


def residual_reference(x_nchw, w1_hwio, w2_io, wup_io=None, bup=None):
    """Pure-JAX reference (mirrors the PyTorch forward exactly)."""
    Cin = x_nchw.shape[1]
    Cout = w1_hwio.shape[-1]
    dn = ("NCHW", "HWIO", "NCHW")
    res = x_nchw
    h = jax.nn.relu(x_nchw)
    h = lax.conv_general_dilated(h, w1_hwio, (1, 1), "SAME", dimension_numbers=dn)
    h = jax.nn.relu(h)
    h = lax.conv_general_dilated(h, w2_io[None, None], (1, 1), "VALID",
                                 dimension_numbers=dn)
    if Cin != Cout:
        res = lax.conv_general_dilated(res, wup_io[None, None], (1, 1), "VALID",
                                       dimension_numbers=dn)
        res = res + bup[None, :, None, None]
    return h + res


if __name__ == "__main__":
    key = jax.random.PRNGKey(0)

    # --- case 1: in_channels != out_channels (channel_up branch active) ---
    B, Cin, Cout, H, W = 2, 4, 8, 16, 16
    kx, k1, k2, k3, k4, k5 = jax.random.split(key, 6)
    x = jax.random.normal(kx, (B, Cin, H, W), dtype=jnp.float32)
    w1 = jax.random.normal(k1, (3, 3, Cin, Cout), dtype=jnp.float32) * 0.1    # cnn1 (HWIO)
    w2 = jax.random.normal(k2, (Cout, Cout), dtype=jnp.float32) * 0.1         # cnn2 1x1 (I,O)
    wup = jax.random.normal(k3, (Cin, Cout), dtype=jnp.float32) * 0.1         # channel_up (I,O)
    bup = jax.random.normal(k4, (Cout,), dtype=jnp.float32) * 0.1             # channel_up bias

    out = residual_forward(x, w1, w2, wup, bup)
    jax.block_until_ready(out)
    ref = residual_reference(x, w1, w2, wup, bup)
    assert out.shape == (B, Cout, H, W)
    assert jnp.allclose(out, ref, atol=1e-4, rtol=1e-4), \
        f"max err {jnp.max(jnp.abs(out - ref))}"

    # --- case 2: in_channels == out_channels (identity residual, no wup/bup DMA) ---
    C2 = 8
    x2 = jax.random.normal(k5, (B, C2, H, W), dtype=jnp.float32)
    w1b = jax.random.normal(k1, (3, 3, C2, C2), dtype=jnp.float32) * 0.1
    w2b = jax.random.normal(k2, (C2, C2), dtype=jnp.float32) * 0.1
    out2 = residual_forward(x2, w1b, w2b)
    jax.block_until_ready(out2)
    ref2 = residual_reference(x2, w1b, w2b)
    assert out2.shape == (B, C2, H, W)
    assert jnp.allclose(out2, ref2, atol=1e-4, rtol=1e-4), \
        f"max err {jnp.max(jnp.abs(out2 - ref2))}"

    print("KERNEL_OK")
</pallas_src>

<mosaic_0001>
module attributes {stable_mosaic.version = 11 : i64} {
  func.func @_residual_kernel(%arg0: i32, %arg1: memref<1x4x16x16xf32, #tpu.memory_space<vmem>>, %arg2: memref<8x36xf32, #tpu.memory_space<vmem>>, %arg3: memref<8x12xf32, #tpu.memory_space<vmem>>, %arg4: memref<8x1xf32, #tpu.memory_space<vmem>>, %arg5: memref<1x8x256xf32, #tpu.memory_space<vmem>>) attributes {dimension_semantics = [#tpu.dimension_semantics<parallel>], iteration_bounds = array<i64: 2>, scalar_prefetch = 0 : i64, scratch_operands = 0 : i64, tpu.core_type = #tpu.core_type<tc>, window_params = [{transform_indices = @transform_0, window_bounds = array<i64: 1, 4, 16, 16>}, {pipeline_mode = #tpu.pipeline_mode<synchronous>, transform_indices = @transform_1, window_bounds = array<i64: 8, 36>}, {pipeline_mode = #tpu.pipeline_mode<synchronous>, transform_indices = @transform_2, window_bounds = array<i64: 8, 12>}, {pipeline_mode = #tpu.pipeline_mode<synchronous>, transform_indices = @transform_3, window_bounds = array<i64: 8, 1>}, {transform_indices = @transform_4, window_bounds = array<i64: 1, 8, 256>}]} {
    %c0 = arith.constant 0 : index
    %c0_0 = arith.constant 0 : index
    %c0_1 = arith.constant 0 : index
    %c0_2 = arith.constant 0 : index
    %0 = vector.load %arg1[%c0, %c0_0, %c0_1, %c0_2] : memref<1x4x16x16xf32, #tpu.memory_space<vmem>>, vector<1x4x16x16xf32>
    %1 = vector.shape_cast %0 : vector<1x4x16x16xf32> to vector<4x16x16xf32>
    %cst = arith.constant 0.000000e+00 : f32
    %2 = vector.broadcast %cst : f32 to vector<4x16x16xf32>
    %3 = arith.maximumf %1, %2 : vector<4x16x16xf32>
    %cst_3 = arith.constant 0.000000e+00 : f32
    %4 = vector.broadcast %cst_3 : f32 to vector<4x1x16xf32>
    %5 = tpu.concatenate %4, %3, %4 in 1 : vector<4x1x16xf32>, vector<4x16x16xf32>, vector<4x1x16xf32> -> vector<4x18x16xf32>
    %cst_4 = arith.constant 0.000000e+00 : f32
    %6 = vector.broadcast %cst_4 : f32 to vector<4x18x1xf32>
    %7 = tpu.concatenate %6, %5, %6 in 2 : vector<4x18x1xf32>, vector<4x18x16xf32>, vector<4x18x1xf32> -> vector<4x18x18xf32>
    %8 = vector.extract_strided_slice %7 {offsets = [0, 0, 0], sizes = [4, 16, 16], strides = [1, 1, 1]} : vector<4x18x18xf32> to vector<4x16x16xf32>
    %9 = vector.shape_cast %8 : vector<4x16x16xf32> to vector<4x256xf32>
    %10 = vector.extract_strided_slice %7 {offsets = [0, 0, 1], sizes = [4, 16, 16], strides = [1, 1, 1]} : vector<4x18x18xf32> to vector<4x16x16xf32>
    %11 = vector.shape_cast %10 : vector<4x16x16xf32> to vector<4x256xf32>
    %12 = vector.extract_strided_slice %7 {offsets = [0, 0, 2], sizes = [4, 16, 16], strides = [1, 1, 1]} : vector<4x18x18xf32> to vector<4x16x16xf32>
    %13 = vector.shape_cast %12 : vector<4x16x16xf32> to vector<4x256xf32>
    %14 = vector.extract_strided_slice %7 {offsets = [0, 1, 0], sizes = [4, 16, 16], strides = [1, 1, 1]} : vector<4x18x18xf32> to vector<4x16x16xf32>
    %15 = vector.shape_cast %14 : vector<4x16x16xf32> to vector<4x256xf32>
    %16 = vector.extract_strided_slice %7 {offsets = [0, 1, 1], sizes = [4, 16, 16], strides = [1, 1, 1]} : vector<4x18x18xf32> to vector<4x16x16xf32>
    %17 = vector.shape_cast %16 : vector<4x16x16xf32> to vector<4x256xf32>
    %18 = vector.extract_strided_slice %7 {offsets = [0, 1, 2], sizes = [4, 16, 16], strides = [1, 1, 1]} : vector<4x18x18xf32> to vector<4x16x16xf32>
    %19 = vector.shape_cast %18 : vector<4x16x16xf32> to vector<4x256xf32>
    %20 = vector.extract_strided_slice %7 {offsets = [0, 2, 0], sizes = [4, 16, 16], strides = [1, 1, 1]} : vector<4x18x18xf32> to vector<4x16x16xf32>
    %21 = vector.shape_cast %20 : vector<4x16x16xf32> to vector<4x256xf32>
    %22 = vector.extract_strided_slice %7 {offsets = [0, 2, 1], sizes = [4, 16, 16], strides = [1, 1, 1]} : vector<4x18x18xf32> to vector<4x16x16xf32>
    %23 = vector.shape_cast %22 : vector<4x16x16xf32> to vector<4x256xf32>
    %24 = vector.extract_strided_slice %7 {offsets = [0, 2, 2], sizes = [4, 16, 16], strides = [1, 1, 1]} : vector<4x18x18xf32> to vector<4x16x16xf32>
    %25 = vector.shape_cast %24 : vector<4x16x16xf32> to vector<4x256xf32>
    %26 = tpu.concatenate %9, %11, %13, %15, %17, %19, %21, %23, %25 in 0 : vector<4x256xf32>, vector<4x256xf32>, vector<4x256xf32>, vector<4x256xf32>, vector<4x256xf32>, vector<4x256xf32>, vector<4x256xf32>, vector<4x256xf32>, vector<4x256xf32> -> vector<36x256xf32>
    %c0_5 = arith.constant 0 : index
    %c0_6 = arith.constant 0 : index
    %27 = vector.load %arg2[%c0_5, %c0_6] : memref<8x36xf32, #tpu.memory_space<vmem>>, vector<8x36xf32>
    %cst_7 = arith.constant dense<0.000000e+00> : vector<8x256xf32>
    %28 = tpu.matmul %27, %26, %cst_7 {dimension_numbers = #tpu.dot_dimension_numbers<[1], [0], [0], [1], [0, 0, 1, 1], [], []>} : vector<8x36xf32>, vector<36x256xf32>, vector<8x256xf32> -> vector<8x256xf32>
    %cst_8 = arith.constant 0.000000e+00 : f32
    %29 = vector.broadcast %cst_8 : f32 to vector<8x256xf32>
    %30 = arith.maximumf %28, %29 : vector<8x256xf32>
    %31 = vector.shape_cast %1 : vector<4x16x16xf32> to vector<4x256xf32>
    %32 = tpu.concatenate %30, %31 in 0 : vector<8x256xf32>, vector<4x256xf32> -> vector<12x256xf32>
    %c0_9 = arith.constant 0 : index
    %c0_10 = arith.constant 0 : index
    %33 = vector.load %arg3[%c0_9, %c0_10] : memref<8x12xf32, #tpu.memory_space<vmem>>, vector<8x12xf32>
    %cst_11 = arith.constant dense<0.000000e+00> : vector<8x256xf32>
    %34 = tpu.matmul %33, %32, %cst_11 {dimension_numbers = #tpu.dot_dimension_numbers<[1], [0], [0], [1], [0, 0, 1, 1], [], []>} : vector<8x12xf32>, vector<12x256xf32>, vector<8x256xf32> -> vector<8x256xf32>
    %c0_12 = arith.constant 0 : index
    %c0_13 = arith.constant 0 : index
    %35 = vector.load %arg4[%c0_12, %c0_13] : memref<8x1xf32, #tpu.memory_space<vmem>>, vector<8x1xf32>
    %36 = vector.broadcast %35 : vector<8x1xf32> to vector<8x256xf32>
    %37 = arith.addf %34, %36 : vector<8x256xf32>
    %c0_14 = arith.constant 0 : index
    %c0_15 = arith.constant 0 : index
    %c0_16 = arith.constant 0 : index
    %38 = vector.load %arg5[%c0_14, %c0_15, %c0_16] : memref<1x8x256xf32, #tpu.memory_space<vmem>>, vector<1x8x256xf32>
    %39 = vector.shape_cast %38 : vector<1x8x256xf32> to vector<8x256xf32>
    %40 = vector.shape_cast %37 : vector<8x256xf32> to vector<1x8x256xf32>
    tpu.vector_store %arg5[%c0_14, %c0_15, %c0_16], %40 {strides = array<i32>} : memref<1x8x256xf32, #tpu.memory_space<vmem>>, vector<1x8x256xf32>,
    return
  }
  func.func @transform_0(%arg0: i32) -> (i32, i32, i32, i32) {
    %c0_i32 = arith.constant 0 : i32
    %c0_i32_0 = arith.constant 0 : i32
    %c0_i32_1 = arith.constant 0 : i32
    %c0_i32_2 = arith.constant 0 : i32
    return %arg0, %c0_i32, %c0_i32_0, %c0_i32_1 : i32, i32, i32, i32
  }
  func.func @transform_1(%arg0: i32) -> (i32, i32) {
    %c0_i32 = arith.constant 0 : i32
    %c0_i32_0 = arith.constant 0 : i32
    %c0_i32_1 = arith.constant 0 : i32
    return %c0_i32, %c0_i32_0 : i32, i32
  }
  func.func @transform_2(%arg0: i32) -> (i32, i32) {
    %c0_i32 = arith.constant 0 : i32
    %c0_i32_0 = arith.constant 0 : i32
    %c0_i32_1 = arith.constant 0 : i32
    return %c0_i32, %c0_i32_0 : i32, i32
  }
  func.func @transform_3(%arg0: i32) -> (i32, i32) {
    %c0_i32 = arith.constant 0 : i32
    %c0_i32_0 = arith.constant 0 : i32
    %c0_i32_1 = arith.constant 0 : i32
    return %c0_i32, %c0_i32_0 : i32, i32
  }
  func.func @transform_4(%arg0: i32) -> (i32, i32, i32) {
    %c0_i32 = arith.constant 0 : i32
    %c0_i32_0 = arith.constant 0 : i32
    %c0_i32_1 = arith.constant 0 : i32
    return %arg0, %c0_i32, %c0_i32_0 : i32, i32, i32
  }
}

</mosaic_0001>

<llo_original>
// kernel: tpu_custom_call.1
$region0: #{tpu_custom_call.1}
  #allocation0 [shape = 'u32[]', space=smem, size = 0x4, offset = 0x4, fixed_abs, tag = 'smem constant byte address 0x4 - core index']
  #allocation1 [shape = 'u32[144,128]{1,0:T(1,128)}', space=vmem, size = 0x12000, scoped, tag = 'internal scratch']
  %s0 = inlined_call_operand.hbm [shape: f32[2,4,16,16], index: 0, kind: input, shape index: {}]
  %s1 = inlined_call_operand.vmem [shape: f32[8,36], index: 1, kind: input, shape index: {}]
  %s2 = inlined_call_operand.vmem [shape: f32[8,12], index: 2, kind: input, shape index: {}]
  %s3 = inlined_call_operand.vmem [shape: f32[8,1], index: 3, kind: input, shape index: {}]
  %s4 = inlined_call_operand.hbm [shape: f32[2,8,256], index: 4, kind: output, shape index: {}]
  %s5 = sld [smem:[#allocation0]]
  $region53: #{tpu_custom_call.1} parent=0
    _
  %s7 = ssub.s32 1, %s5
  %s8 = scalar_select 0, %s7, %s5
  $region1: #{tpu_custom_call.1} parent=0
    #allocation2 [shape = 'u8[65536]{0}', space=vmem, size = 0x10000, scoped, tag = 'input window, operand 0']
    #allocation3 [shape = 's32[2]{0}', space=sflag, size = 0x8, scoped, tag = 'scoped memory for tpu_custom_call.1']
    #allocation4 [shape = 's32[2]{0}', space=sflag, size = 0x8, scoped, tag = 'scoped memory for tpu_custom_call.1']
    #allocation5 [shape = 'u8[16384]{0}', space=vmem, size = 0x4000, scoped, tag = 'output window, operand 0']
    %9 = vsyncpa [#allocation3], 0
    %s10 = scalar_lea.sflag [#allocation3], 1
    %11 = vsyncpa %s10, 0
    %12 = vsyncpa [#allocation4], 0
    %s13 = scalar_lea.sflag [#allocation4], 1
    %14 = vsyncpa %s13, 0
    loop: start=0, step=1, limit=4
    $region2: #{tpu_custom_call.1} parent=1 // loop_pre_header
      _
    $region3: #{tpu_custom_call.1} parent=1 // loop_header
      %s16 = sphi 0, %s20
      %p17 = scmp.ge.s32.totalorder %s16, 4
      %s26 = sphi 0, %s28
      %s29 = sphi 0, %s26
      %s30 = sphi 0, %s29
      %s46 = sphi 0, %s30
      %s50 = sphi 0, %s50
      %s52 = sphi 0, %s50
      %s53 = sphi 0, %s52
      %s67 = sphi 0, %s53
      %s71 = sphi 0, %s71
      %s73 = sphi 0, %s71
      %s74 = sphi 0, %s73
      %s88 = sphi 0, %s74
      %s92 = sphi 0, %s92
      %s94 = sphi 0, %s92
      %s95 = sphi 0, %s94
      %s109 = sphi 0, %s95
      %s115 = sphi 0, %s117
      %s118 = sphi 0, %s115
      %s119 = sphi 0, %s118
      %s135 = sphi 0, %s119
    $region4: #{tpu_custom_call.1} parent=1 // loop_header_branch
      %19 = sbr.rel (%p17) target = $region8
    $region5: #{tpu_custom_call.1} parent=1 // loop_body
      %s21 = ssub.s32 %s16, 1
      %s22 = ssub.s32 %s16, 2
      %s23 = sadd.s32 %s16, 1
      %s24 = ssub.s32 %s16, %s23
      %p25 = scmp.eq.s32.totalorder %s24, 0
      %s27 = sadd.s32 %s26, 1
      %s28 = scalar_select %p25, %s26, %s27
      %p31 = pneg %p25
      %p32 = scmp.eq.s32.totalorder %s16, 1
      %p33 = por %p31, %p32
      %p34 = scmp.ne.s32.totalorder %s26, %s29
      %p35 = scmp.eq.s32.totalorder %s16, 0
      %p36 = por %p34, %p35
      %p37 = scmp.ne.s32.totalorder %s26, %s29
      %p38 = scmp.eq.s32.totalorder %s21, 1
      %p39 = por %p37, %p38
      %p40 = scmp.ne.s32.totalorder %s29, %s30
      %p41 = scmp.eq.s32.totalorder %s21, 0
      %p42 = por %p40, %p41
      %p43 = scmp.ne.s32.totalorder %s29, %s30
      %p44 = scmp.eq.s32.totalorder %s22, 1
      %p45 = por %p43, %p44
      %p47 = scmp.ne.s32.totalorder %s30, %s46
      %p48 = scmp.eq.s32.totalorder %s22, 0
      %p49 = por %p47, %p48
      %s51 = sadd.s32 %s50, 1
      %p54 = scmp.eq.s32.totalorder %s16, 1
      %p55 = scmp.ne.s32.totalorder %s50, %s52
      %p56 = scmp.eq.s32.totalorder %s16, 0
      %p57 = por %p55, %p56
      %p58 = scmp.ne.s32.totalorder %s50, %s52
      %p59 = scmp.eq.s32.totalorder %s21, 1
      %p60 = por %p58, %p59
      %p61 = scmp.ne.s32.totalorder %s52, %s53
      %p62 = scmp.eq.s32.totalorder %s21, 0
      %p63 = por %p61, %p62
      %p64 = scmp.ne.s32.totalorder %s52, %s53
      %p65 = scmp.eq.s32.totalorder %s22, 1
      %p66 = por %p64, %p65
      %p68 = scmp.ne.s32.totalorder %s53, %s67
      %p69 = scmp.eq.s32.totalorder %s22, 0
      %p70 = por %p68, %p69
      %s72 = sadd.s32 %s71, 1
      %p75 = scmp.eq.s32.totalorder %s16, 1
      %p76 = scmp.ne.s32.totalorder %s71, %s73
      %p77 = scmp.eq.s32.totalorder %s16, 0
      %p78 = por %p76, %p77
      %p79 = scmp.ne.s32.totalorder %s71, %s73
      %p80 = scmp.eq.s32.totalorder %s21, 1
      %p81 = por %p79, %p80
      %p82 = scmp.ne.s32.totalorder %s73, %s74
      %p83 = scmp.eq.s32.totalorder %s21, 0
      %p84 = por %p82, %p83
      %p85 = scmp.ne.s32.totalorder %s73, %s74
      %p86 = scmp.eq.s32.totalorder %s22, 1
      %p87 = por %p85, %p86
      %p89 = scmp.ne.s32.totalorder %s74, %s88
      %p90 = scmp.eq.s32.totalorder %s22, 0
      %p91 = por %p89, %p90
      %s93 = sadd.s32 %s92, 1
      %p96 = scmp.eq.s32.totalorder %s16, 1
      %p97 = scmp.ne.s32.totalorder %s92, %s94
      %p98 = scmp.eq.s32.totalorder %s16, 0
      %p99 = por %p97, %p98
      %p100 = scmp.ne.s32.totalorder %s92, %s94
      %p101 = scmp.eq.s32.totalorder %s21, 1
      %p102 = por %p100, %p101
      %p103 = scmp.ne.s32.totalorder %s94, %s95
      %p104 = scmp.eq.s32.totalorder %s21, 0
      %p105 = por %p103, %p104
      %p106 = scmp.ne.s32.totalorder %s94, %s95
      %p107 = scmp.eq.s32.totalorder %s22, 1
      %p108 = por %p106, %p107
      %p110 = scmp.ne.s32.totalorder %s95, %s109
      %p111 = scmp.eq.s32.totalorder %s22, 0
      %p112 = por %p110, %p111
      %s113 = ssub.s32 %s16, %s23
      %p114 = scmp.eq.s32.totalorder %s113, 0
      %s116 = sadd.s32 %s115, 1
      %s117 = scalar_select %p114, %s115, %s116
      %p120 = pneg %p114
      %p121 = scmp.eq.s32.totalorder %s16, 1
      %p122 = por %p120, %p121
      %p123 = scmp.ne.s32.totalorder %s115, %s118
      %p124 = scmp.eq.s32.totalorder %s16, 0
      %p125 = por %p123, %p124
      %p126 = scmp.ne.s32.totalorder %s115, %s118
      %p127 = scmp.eq.s32.totalorder %s21, 1
      %p128 = por %p126, %p127
      %p129 = scmp.ne.s32.totalorder %s118, %s119
      %p130 = scmp.eq.s32.totalorder %s21, 0
      %p131 = por %p129, %p130
      %p132 = scmp.ne.s32.totalorder %s118, %s119
      %p133 = scmp.eq.s32.totalorder %s22, 1
      %p134 = por %p132, %p133
      %p136 = scmp.ne.s32.totalorder %s119, %s135
      %p137 = scmp.eq.s32.totalorder %s22, 0
      %p138 = por %p136, %p137
      %p139 = scmp.le.s32.totalorder 1, %s16
      %p140 = scmp.lt.s32.totalorder %s16, 3
      %p141 = pnand %p139, %p140
      %p142 = pneg %p141
      // Predicated region
      $region9: #{tpu_custom_call.1} parent=5 // pred_check
        _
      $region10: #{tpu_custom_call.1} parent=5 // pred_check_branch
        %144 = sbr.rel (%p141) target = $region12
      $region11: #{tpu_custom_call.1} parent=5 // pred_region
        %s145 = ssub.s32 %s16, 1
        // Predicated region
        $region13: #{tpu_custom_call.1} parent=11 // pred_check
          %p146 = pneg %p63
        $region14: #{tpu_custom_call.1} parent=11 // pred_check_branch
          %148 = sbr.rel (%p146) target = $region16
        $region15: #{tpu_custom_call.1} parent=11 // pred_region
          _
        $region16: #{tpu_custom_call.1} parent=11 // pred_fallthru
          _
        // Predicated region
        $region17: #{tpu_custom_call.1} parent=11 // pred_check
          %p149 = pneg %p84
        $region18: #{tpu_custom_call.1} parent=11 // pred_check_branch
          %151 = sbr.rel (%p149) target = $region20
        $region19: #{tpu_custom_call.1} parent=11 // pred_region
          _
        $region20: #{tpu_custom_call.1} parent=11 // pred_fallthru
          _
        // Predicated region
        $region21: #{tpu_custom_call.1} parent=11 // pred_check
          %p152 = pneg %p105
        $region22: #{tpu_custom_call.1} parent=11 // pred_check_branch
          %154 = sbr.rel (%p152) target = $region24
        $region23: #{tpu_custom_call.1} parent=11 // pred_region
          _
        $region24: #{tpu_custom_call.1} parent=11 // pred_fallthru
          _
      $region12: #{tpu_custom_call.1} parent=5 // pred_fallthru
        _
      %p155 = scmp.lt.s32.totalorder %s16, 2
      // Predicated region
      $region25: #{tpu_custom_call.1} parent=5 // pred_check
        %p156 = pneg %p155
      $region26: #{tpu_custom_call.1} parent=5 // pred_check_branch
        %158 = sbr.rel (%p156) target = $region28
      $region27: #{tpu_custom_call.1} parent=5 // pred_region
        // Predicated region
        $region29: #{tpu_custom_call.1} parent=27 // pred_check
          %p159 = pneg %p36
        $region30: #{tpu_custom_call.1} parent=27 // pred_check_branch
          %161 = sbr.rel (%p159) target = $region32
        $region31: #{tpu_custom_call.1} parent=27 // pred_region
          %s162 = sand.u32 %s26, 1
          %s163 = scalar_lea.sflag [#allocation3], %s162
          %s164 = sand.u32 %s26, 1
          %s165 = smul.addr %s164, 64
          %s166 = scalar_lea.vmem [#allocation2], %s165
          %s168 = ssub.s32 1024, 1024
          %169 = vsyncadd %s163, %s168
          %s170 = smul.addr %s16, 8
          %s171 = smul.addr %s170, 128
          %s172 = scalar_lea.hbm %s0, %s171
          %s173 = sshll.u32 %s166, 4
          %s174 = int_to_ptr.vmem [resolvable:$true] %s173
          %179 = dma.hbm_to_vmem [thread:$0]  %s172, 1024, %s174, %s163, 128, 128, 8
        $region32: #{tpu_custom_call.1} parent=27 // pred_fallthru
          _
      $region28: #{tpu_custom_call.1} parent=5 // pred_fallthru
        _
      %p180 = scmp.le.s32.totalorder 1, %s16
      %p181 = scmp.lt.s32.totalorder %s16, 3
      %p182 = pnand %p180, %p181
      %p183 = pneg %p182
      // Predicated region
      $region33: #{tpu_custom_call.1} parent=5 // pred_check
        _
      $region34: #{tpu_custom_call.1} parent=5 // pred_check_branch
        %185 = sbr.rel (%p182) target = $region36
      $region35: #{tpu_custom_call.1} parent=5 // pred_region
        %s186 = ssub.s32 %s16, 1
        %s187 = sand.u32 %s29, 1
        %s188 = scalar_lea.sflag [#allocation3], %s187
        %s189 = sand.u32 %s29, 1
        %s190 = smul.addr %s189, 64
        %s191 = scalar_lea.vmem [#allocation2], %s190
        // Predicated region
        $region37: #{tpu_custom_call.1} parent=35 // pred_check
          %p192 = pneg %p42
        $region38: #{tpu_custom_call.1} parent=35 // pred_check_branch
          %194 = sbr.rel (%p192) target = $region40
        $region39: #{tpu_custom_call.1} parent=35 // pred_region
          %195 = dma.done %s188, 1024
        $region40: #{tpu_custom_call.1} parent=35 // pred_fallthru
          _
        %s196 = sand.u32 %s29, 1
        %s197 = scalar_lea.sflag [#allocation3], %s196
        %s198 = sand.u32 %s29, 1
        %s199 = smul.addr %s198, 64
        %s200 = scalar_lea.vmem [#allocation2], %s199
        %p201 = pneg %p42
        %p202 = pneg %p39
        %p203 = pneg %p63
        %p204 = pneg %p60
        %p205 = pneg %p84
        %p206 = pneg %p81
        %p207 = pneg %p105
        %p208 = pneg %p102
        %p209 = pneg %p131
        %p210 = pneg %p128
        %s211 = sand.u32 %s118, 1
        %s212 = scalar_lea.sflag [#allocation4], %s211
        %s213 = sand.u32 %s118, 1
        %s214 = smul.addr %s213, 16
        %s215 = scalar_lea.vmem [#allocation5], %s214
        %v216 = vld [vmem:[%s191] sm:$0xff]
        %v217 = vld [vmem:[%s191 + $0x8] sm:$0xff]
        %v218 = vld [vmem:[%s191 + $0x10] sm:$0xff]
        %v219 = vld [vmem:[%s191 + $0x18] sm:$0xff]
        %v220 = vld [vmem:[%s191 + $0x20] sm:$0xff]
        %v221 = vld [vmem:[%s191 + $0x28] sm:$0xff]
        %v222 = vld [vmem:[%s191 + $0x30] sm:$0xff]
        %v223 = vld [vmem:[%s191 + $0x38] sm:$0xff]
        %v224 = vmax.f32 %v216, 0.0
        %v225 = vmax.f32 %v217, 0.0
        %v226 = vmax.f32 %v218, 0.0
        %v227 = vmax.f32 %v219, 0.0
        %v228 = vmax.f32 %v220, 0.0
        %v229 = vmax.f32 %v221, 0.0
        %v230 = vmax.f32 %v222, 0.0
        %v231 = vmax.f32 %v223, 0.0
        %vm240 = vcmask 1040384
        %v241 = vrot.slane %v224, 7
        %v242 = vrot.slane %v225, 7
        %v243 = vsel %vm240, %v241, %v242
        %v244 = vrot.slane %v226, 7
        %v245 = vrot.slane %v227, 7
        %v246 = vsel %vm240, %v244, %v245
        %v247 = vrot.slane %v228, 7
        %v248 = vrot.slane %v229, 7
        %v249 = vsel %vm240, %v247, %v248
        %v250 = vrot.slane %v230, 7
        %v251 = vrot.slane %v231, 7
        %v252 = vsel %vm240, %v250, %v251
        %v261 = vsel %vm240, 0.0, %v241
        %v262 = vsel %vm240, 0.0, %v244
        %v263 = vsel %vm240, 0.0, %v247
        %v264 = vsel %vm240, 0.0, %v250
        %v265 = vsel %vm240, %v242, 0.0
        %v266 = vsel %vm240, %v245, 0.0
        %v267 = vsel %vm240, %v248, 0.0
        %v268 = vsel %vm240, %v251, 0.0
        %277 = vrot.lane.b32.xlu0 %v261, 1
        %v278 = vpop.permute.xlu0 %277
        %279 = vrot.lane.b32.xlu0 %v243, 1
        %v280 = vpop.permute.xlu0 %279
        %281 = vrot.lane.b32.xlu0 %v265, 1
        %v282 = vpop.permute.xlu0 %281
        %283 = vrot.lane.b32.xlu0 %v262, 1
        %v284 = vpop.permute.xlu0 %283
        %285 = vrot.lane.b32.xlu0 %v246, 1
        %v286 = vpop.permute.xlu0 %285
        %287 = vrot.lane.b32.xlu0 %v266, 1
        %v288 = vpop.permute.xlu0 %287
        %289 = vrot.lane.b32.xlu0 %v263, 1
        %v290 = vpop.permute.xlu0 %289
        %291 = vrot.lane.b32.xlu0 %v249, 1
        %v292 = vpop.permute.xlu0 %291
        %293 = vrot.lane.b32.xlu0 %v267, 1
        %v294 = vpop.permute.xlu0 %293
        %295 = vrot.lane.b32.xlu0 %v264, 1
        %v296 = vpop.permute.xlu0 %295
        %297 = vrot.lane.b32.xlu0 %v252, 1
        %v298 = vpop.permute.xlu0 %297
        %299 = vrot.lane.b32.xlu0 %v268, 1
        %v300 = vpop.permute.xlu0 %299
        %vm313 = vcmask 7168
        %v314 = vsel %vm313, 0.0, %v278
        %v315 = vsel %vm313, 0.0, %v280
        %v316 = vsel %vm313, 0.0, %v282
        %v317 = vsel %vm313, 0.0, %v284
        %v318 = vsel %vm313, 0.0, %v286
        %v319 = vsel %vm313, 0.0, %v288
        %v320 = vsel %vm313, 0.0, %v290
        %v321 = vsel %vm313, 0.0, %v292
        %v322 = vsel %vm313, 0.0, %v294
        %v323 = vsel %vm313, 0.0, %v296
        %v324 = vsel %vm313, 0.0, %v298
        %v325 = vsel %vm313, 0.0, %v300
        %vm326 = vcmask 138240
        %v327 = vsel %vm326, %v314, 0.0
        %v328 = vsel %vm326, %v315, 0.0
        %v329 = vsel %vm326, %v316, 0.0
        %v330 = vsel %vm326, %v317, 0.0
        %v331 = vsel %vm326, %v318, 0.0
        %v332 = vsel %vm326, %v319, 0.0
        %v333 = vsel %vm326, %v320, 0.0
        %v334 = vsel %vm326, %v321, 0.0
        %v335 = vsel %vm326, %v322, 0.0
        %v336 = vsel %vm326, %v323, 0.0
        %v337 = vsel %vm326, %v324, 0.0
        %v338 = vsel %vm326, %v325, 0.0
        %v339 = vcombine.low %v327, %v333
        %v340 = vcombine.high %v327, %v333
        %v342 = vunpack.c.l.s4 1983009808
        %v343 = vunpack.c.0.s8 %v342
        %v344 = vlaneseq
        %v345 = vshrl.u32 %v344, 7
        %v346 = vsub.s32 %v343, %v345
        %v347 = vrot.slane %v339, %v346
        %v349 = vunpack.c.l.s4 1983009808
        %v350 = vunpack.c.0.s8 %v349
        %v351 = vlaneseq
        %v352 = vshrl.u32 %v351, 7
        %v353 = vsub.s32 %v350, %v352
        %v354 = vrot.slane %v340, %v353
        %v355 = vcombine.low %v330, %v336
        %v356 = vcombine.high %v330, %v336
        %v358 = vunpack.c.l.s4 1983009808
        %v359 = vunpack.c.0.s8 %v358
        %v360 = vlaneseq
        %v361 = vshrl.u32 %v360, 7
        %v362 = vsub.s32 %v359, %v361
        %v363 = vrot.slane %v355, %v362
        %v365 = vunpack.c.l.s4 1983009808
        %v366 = vunpack.c.0.s8 %v365
        %v367 = vlaneseq
        %v368 = vshrl.u32 %v367, 7
        %v369 = vsub.s32 %v366, %v368
        %v370 = vrot.slane %v356, %v369
        %v371 = vcombine.low %v347, %v363
        %v372 = vcombine.high %v347, %v363
        %v374 = vunpack.c.l.s4 1934713408
        %v375 = vunpack.c.0.s8 %v374
        %v376 = vlaneseq
        %v377 = vshrl.u32 %v376, 7
        %v378 = vsub.s32 %v375, %v377
        %v379 = vrot.slane %v371, %v378
        %v381 = vunpack.c.l.s4 1934713408
        %v382 = vunpack.c.0.s8 %v381
        %v383 = vlaneseq
        %v384 = vshrl.u32 %v383, 7
        %v385 = vsub.s32 %v382, %v384
        %v386 = vrot.slane %v372, %v385
        %v387 = vcombine.low %v354, %v370
        %v388 = vcombine.high %v354, %v370
        %v390 = vunpack.c.l.s4 1934713408
        %v391 = vunpack.c.0.s8 %v390
        %v392 = vlaneseq
        %v393 = vshrl.u32 %v392, 7
        %v394 = vsub.s32 %v391, %v393
        %v395 = vrot.slane %v387, %v394
        %v397 = vunpack.c.l.s4 1934713408
        %v398 = vunpack.c.0.s8 %v397
        %v399 = vlaneseq
        %v400 = vshrl.u32 %v399, 7
        %v401 = vsub.s32 %v398, %v400
        %v402 = vrot.slane %v388, %v401
        %v403 = vcombine.high %v379, 0.0
        %v404 = vcombine.high %v386, 0.0
        %v405 = vcombine.high %v395, 0.0
        %v406 = vcombine.high %v402, 0.0
        %v407 = vcombine.low %v328, %v334
        %v408 = vcombine.high %v328, %v334
        %v410 = vunpack.c.l.s4 1983009808
        %v411 = vunpack.c.0.s8 %v410
        %v412 = vlaneseq
        %v413 = vshrl.u32 %v412, 7
        %v414 = vsub.s32 %v411, %v413
        %v415 = vrot.slane %v407, %v414
        %v417 = vunpack.c.l.s4 1983009808
        %v418 = vunpack.c.0.s8 %v417
        %v419 = vlaneseq
        %v420 = vshrl.u32 %v419, 7
        %v421 = vsub.s32 %v418, %v420
        %v422 = vrot.slane %v408, %v421
        %v423 = vcombine.low %v331, %v337
        %v424 = vcombine.high %v331, %v337
        %v426 = vunpack.c.l.s4 1983009808
        %v427 = vunpack.c.0.s8 %v426
        %v428 = vlaneseq
        %v429 = vshrl.u32 %v428, 7
        %v430 = vsub.s32 %v427, %v429
        %v431 = vrot.slane %v423, %v430
        %v433 = vunpack.c.l.s4 1983009808
        %v434 = vunpack.c.0.s8 %v433
        %v435 = vlaneseq
        %v436 = vshrl.u32 %v435, 7
        %v437 = vsub.s32 %v434, %v436
        %v438 = vrot.slane %v424, %v437
        %v439 = vcombine.low %v415, %v431
        %v440 = vcombine.high %v415, %v431
        %v442 = vunpack.c.l.s4 1934713408
        %v443 = vunpack.c.0.s8 %v442
        %v444 = vlaneseq
        %v445 = vshrl.u32 %v444, 7
        %v446 = vsub.s32 %v443, %v445
        %v447 = vrot.slane %v439, %v446
        %v449 = vunpack.c.l.s4 1934713408
        %v450 = vunpack.c.0.s8 %v449
        %v451 = vlaneseq
        %v452 = vshrl.u32 %v451, 7
        %v453 = vsub.s32 %v450, %v452
        %v454 = vrot.slane %v440, %v453
        %v455 = vcombine.low %v422, %v438
        %v456 = vcombine.high %v422, %v438
        %v458 = vunpack.c.l.s4 1934713408
        %v459 = vunpack.c.0.s8 %v458
        %v460 = vlaneseq
        %v461 = vshrl.u32 %v460, 7
        %v462 = vsub.s32 %v459, %v461
        %v463 = vrot.slane %v455, %v462
        %v465 = vunpack.c.l.s4 1934713408
        %v466 = vunpack.c.0.s8 %v465
        %v467 = vlaneseq
        %v468 = vshrl.u32 %v467, 7
        %v469 = vsub.s32 %v466, %v468
        %v470 = vrot.slane %v456, %v469
        %v471 = vcombine.high %v447, 0.0
        %v472 = vcombine.high %v454, 0.0
        %v473 = vcombine.high %v463, 0.0
        %v474 = vcombine.high %v470, 0.0
        %476 = vrot.lane.b32.xlu0 %v403, 16
        %v477 = vpop.permute.xlu0 %476
        %480 = vrot.lane.b32.xlu0 %v386, 32
        %v481 = vpop.permute.xlu0 %480
        %484 = vrot.lane.b32.xlu0 %v404, 48
        %v485 = vpop.permute.xlu0 %484
        %488 = vrot.lane.b32.xlu0 %v395, 64
        %v489 = vpop.permute.xlu0 %488
        %492 = vrot.lane.b32.xlu0 %v405, 80
        %v493 = vpop.permute.xlu0 %492
        %496 = vrot.lane.b32.xlu0 %v402, 96
        %v497 = vpop.permute.xlu0 %496
        %500 = vrot.lane.b32.xlu0 %v406, 112
        %v501 = vpop.permute.xlu0 %500
        %504 = vrot.lane.b32.xlu0 %v471, 16
        %v505 = vpop.permute.xlu0 %504
        %508 = vrot.lane.b32.xlu0 %v454, 32
        %v509 = vpop.permute.xlu0 %508
        %512 = vrot.lane.b32.xlu0 %v472, 48
        %v513 = vpop.permute.xlu0 %512
        %516 = vrot.lane.b32.xlu0 %v463, 64
        %v517 = vpop.permute.xlu0 %516
        %520 = vrot.lane.b32.xlu0 %v473, 80
        %v521 = vpop.permute.xlu0 %520
        %524 = vrot.lane.b32.xlu0 %v470, 96
        %v525 = vpop.permute.xlu0 %524
        %528 = vrot.lane.b32.xlu0 %v474, 112
        %v529 = vpop.permute.xlu0 %528
        %vm531 = vcmask 130048
        %v532 = vsel %vm531, %v379, %v477
        %vm533 = vcmask 261120
        %v534 = vsel %vm533, %v532, %v481
        %vm535 = vcmask 392192
        %v536 = vsel %vm535, %v534, %v485
        %vm537 = vcmask 523264
        %v538 = vsel %vm537, %v536, %v489
        %vm539 = vcmask 654336
        %v540 = vsel %vm539, %v538, %v493
        %vm541 = vcmask 785408
        %v542 = vsel %vm541, %v540, %v497
        %vm543 = vcmask 916480
        %v544 = vsel %vm543, %v542, %v501
        %v545 = vsel %vm531, %v447, %v505
        %v546 = vsel %vm533, %v545, %v509
        %v547 = vsel %vm535, %v546, %v513
        %v548 = vsel %vm537, %v547, %v517
        %v549 = vsel %vm539, %v548, %v521
        %v550 = vsel %vm541, %v549, %v525
        %v551 = vsel %vm543, %v550, %v529
        %560 = vrot.lane.b32.xlu0 %v327, 127
        %v561 = vpop.permute.xlu0 %560
        %562 = vrot.lane.b32.xlu0 %v328, 127
        %v563 = vpop.permute.xlu0 %562
        %564 = vrot.lane.b32.xlu0 %v330, 127
        %v565 = vpop.permute.xlu0 %564
        %566 = vrot.lane.b32.xlu0 %v331, 127
        %v567 = vpop.permute.xlu0 %566
        %568 = vrot.lane.b32.xlu0 %v333, 127
        %v569 = vpop.permute.xlu0 %568
        %570 = vrot.lane.b32.xlu0 %v334, 127
        %v571 = vpop.permute.xlu0 %570
        %572 = vrot.lane.b32.xlu0 %v336, 127
        %v573 = vpop.permute.xlu0 %572
        %574 = vrot.lane.b32.xlu0 %v337, 127
        %v575 = vpop.permute.xlu0 %574
        %v584 = vcombine.low %v561, %v569
        %v585 = vcombine.high %v561, %v569
        %v587 = vunpack.c.l.s4 1983009808
        %v588 = vunpack.c.0.s8 %v587
        %v589 = vlaneseq
        %v590 = vshrl.u32 %v589, 7
        %v591 = vsub.s32 %v588, %v590
        %v592 = vrot.slane %v584, %v591
        %v594 = vunpack.c.l.s4 1983009808
        %v595 = vunpack.c.0.s8 %v594
        %v596 = vlaneseq
        %v597 = vshrl.u32 %v596, 7
        %v598 = vsub.s32 %v595, %v597
        %v599 = vrot.slane %v585, %v598
        %v600 = vcombine.low %v565, %v573
        %v601 = vcombine.high %v565, %v573
        %v603 = vunpack.c.l.s4 1983009808
        %v604 = vunpack.c.0.s8 %v603
        %v605 = vlaneseq
        %v606 = vshrl.u32 %v605, 7
        %v607 = vsub.s32 %v604, %v606
        %v608 = vrot.slane %v600, %v607
        %v610 = vunpack.c.l.s4 1983009808
        %v611 = vunpack.c.0.s8 %v610
        %v612 = vlaneseq
        %v613 = vshrl.u32 %v612, 7
        %v614 = vsub.s32 %v611, %v613
        %v615 = vrot.slane %v601, %v614
        %v616 = vcombine.low %v592, %v608
        %v617 = vcombine.high %v592, %v608
        %v619 = vunpack.c.l.s4 1934713408
        %v620 = vunpack.c.0.s8 %v619
        %v621 = vlaneseq
        %v622 = vshrl.u32 %v621, 7
        %v623 = vsub.s32 %v620, %v622
        %v624 = vrot.slane %v616, %v623
        %v626 = vunpack.c.l.s4 1934713408
        %v627 = vunpack.c.0.s8 %v626
        %v628 = vlaneseq
        %v629 = vshrl.u32 %v628, 7
        %v630 = vsub.s32 %v627, %v629
        %v631 = vrot.slane %v617, %v630
        %v632 = vcombine.low %v599, %v615
        %v633 = vcombine.high %v599, %v615
        %v635 = vunpack.c.l.s4 1934713408
        %v636 = vunpack.c.0.s8 %v635
        %v637 = vlaneseq
        %v638 = vshrl.u32 %v637, 7
        %v639 = vsub.s32 %v636, %v638
        %v640 = vrot.slane %v632, %v639
        %v642 = vunpack.c.l.s4 1934713408
        %v643 = vunpack.c.0.s8 %v642
        %v644 = vlaneseq
        %v645 = vshrl.u32 %v644, 7
        %v646 = vsub.s32 %v643, %v645
        %v647 = vrot.slane %v633, %v646
        %v648 = vcombine.high %v624, 0.0
        %v649 = vcombine.high %v631, 0.0
        %v650 = vcombine.high %v640, 0.0
        %v651 = vcombine.high %v647, 0.0
        %v652 = vcombine.low %v563, %v571
        %v653 = vcombine.high %v563, %v571
        %v655 = vunpack.c.l.s4 1983009808
        %v656 = vunpack.c.0.s8 %v655
        %v657 = vlaneseq
        %v658 = vshrl.u32 %v657, 7
        %v659 = vsub.s32 %v656, %v658
        %v660 = vrot.slane %v652, %v659
        %v662 = vunpack.c.l.s4 1983009808
        %v663 = vunpack.c.0.s8 %v662
        %v664 = vlaneseq
        %v665 = vshrl.u32 %v664, 7
        %v666 = vsub.s32 %v663, %v665
        %v667 = vrot.slane %v653, %v666
        %v668 = vcombine.low %v567, %v575
        %v669 = vcombine.high %v567, %v575
        %v671 = vunpack.c.l.s4 1983009808
        %v672 = vunpack.c.0.s8 %v671
        %v673 = vlaneseq
        %v674 = vshrl.u32 %v673, 7
        %v675 = vsub.s32 %v672, %v674
        %v676 = vrot.slane %v668, %v675
        %v678 = vunpack.c.l.s4 1983009808
        %v679 = vunpack.c.0.s8 %v678
        %v680 = vlaneseq
        %v681 = vshrl.u32 %v680, 7
        %v682 = vsub.s32 %v679, %v681
        %v683 = vrot.slane %v669, %v682
        %v684 = vcombine.low %v660, %v676
        %v685 = vcombine.high %v660, %v676
        %v687 = vunpack.c.l.s4 1934713408
        %v688 = vunpack.c.0.s8 %v687
        %v689 = vlaneseq
        %v690 = vshrl.u32 %v689, 7
        %v691 = vsub.s32 %v688, %v690
        %v692 = vrot.slane %v684, %v691
        %v694 = vunpack.c.l.s4 1934713408
        %v695 = vunpack.c.0.s8 %v694
        %v696 = vlaneseq
        %v697 = vshrl.u32 %v696, 7
        %v698 = vsub.s32 %v695, %v697
        %v699 = vrot.slane %v685, %v698
        %v700 = vcombine.low %v667, %v683
        %v701 = vcombine.high %v667, %v683
        %v703 = vunpack.c.l.s4 1934713408
        %v704 = vunpack.c.0.s8 %v703
        %v705 = vlaneseq
        %v706 = vshrl.u32 %v705, 7
        %v707 = vsub.s32 %v704, %v706
        %v708 = vrot.slane %v700, %v707
        %v710 = vunpack.c.l.s4 1934713408
        %v711 = vunpack.c.0.s8 %v710
        %v712 = vlaneseq
        %v713 = vshrl.u32 %v712, 7
        %v714 = vsub.s32 %v711, %v713
        %v715 = vrot.slane %v701, %v714
        %v716 = vcombine.high %v692, 0.0
        %v717 = vcombine.high %v699, 0.0
        %v718 = vcombine.high %v708, 0.0
        %v719 = vcombine.high %v715, 0.0
        %721 = vrot.lane.b32.xlu0 %v648, 16
        %v722 = vpop.permute.xlu0 %721
        %725 = vrot.lane.b32.xlu0 %v631, 32
        %v726 = vpop.permute.xlu0 %725
        %729 = vrot.lane.b32.xlu0 %v649, 48
        %v730 = vpop.permute.xlu0 %729
        %733 = vrot.lane.b32.xlu0 %v640, 64
        %v734 = vpop.permute.xlu0 %733
        %737 = vrot.lane.b32.xlu0 %v650, 80
        %v738 = vpop.permute.xlu0 %737
        %741 = vrot.lane.b32.xlu0 %v647, 96
        %v742 = vpop.permute.xlu0 %741
        %745 = vrot.lane.b32.xlu0 %v651, 112
        %v746 = vpop.permute.xlu0 %745
        %749 = vrot.lane.b32.xlu0 %v716, 16
        %v750 = vpop.permute.xlu0 %749
        %753 = vrot.lane.b32.xlu0 %v699, 32
        %v754 = vpop.permute.xlu0 %753
        %757 = vrot.lane.b32.xlu0 %v717, 48
        %v758 = vpop.permute.xlu0 %757
        %761 = vrot.lane.b32.xlu0 %v708, 64
        %v762 = vpop.permute.xlu0 %761
        %765 = vrot.lane.b32.xlu0 %v718, 80
        %v766 = vpop.permute.xlu0 %765
        %769 = vrot.lane.b32.xlu0 %v715, 96
        %v770 = vpop.permute.xlu0 %769
        %773 = vrot.lane.b32.xlu0 %v719, 112
        %v774 = vpop.permute.xlu0 %773
        %v776 = vsel %vm531, %v624, %v722
        %v777 = vsel %vm533, %v776, %v726
        %v778 = vsel %vm535, %v777, %v730
        %v779 = vsel %vm537, %v778, %v734
        %v780 = vsel %vm539, %v779, %v738
        %v781 = vsel %vm541, %v780, %v742
        %v782 = vsel %vm543, %v781, %v746
        %v783 = vsel %vm531, %v692, %v750
        %v784 = vsel %vm533, %v783, %v754
        %v785 = vsel %vm535, %v784, %v758
        %v786 = vsel %vm537, %v785, %v762
        %v787 = vsel %vm539, %v786, %v766
        %v788 = vsel %vm541, %v787, %v770
        %v789 = vsel %vm543, %v788, %v774
        %790 = vrot.lane.b32.xlu0 %v327, 126
        %v791 = vpop.permute.xlu0 %790
        %792 = vrot.lane.b32.xlu0 %v328, 126
        %v793 = vpop.permute.xlu0 %792
        %794 = vrot.lane.b32.xlu0 %v330, 126
        %v795 = vpop.permute.xlu0 %794
        %796 = vrot.lane.b32.xlu0 %v331, 126
        %v797 = vpop.permute.xlu0 %796
        %798 = vrot.lane.b32.xlu0 %v333, 126
        %v799 = vpop.permute.xlu0 %798
        %800 = vrot.lane.b32.xlu0 %v334, 126
        %v801 = vpop.permute.xlu0 %800
        %802 = vrot.lane.b32.xlu0 %v336, 126
        %v803 = vpop.permute.xlu0 %802
        %804 = vrot.lane.b32.xlu0 %v337, 126
        %v805 = vpop.permute.xlu0 %804
        %v814 = vcombine.low %v791, %v799
        %v815 = vcombine.high %v791, %v799
        %v817 = vunpack.c.l.s4 1983009808
        %v818 = vunpack.c.0.s8 %v817
        %v819 = vlaneseq
        %v820 = vshrl.u32 %v819, 7
        %v821 = vsub.s32 %v818, %v820
        %v822 = vrot.slane %v814, %v821
        %v824 = vunpack.c.l.s4 1983009808
        %v825 = vunpack.c.0.s8 %v824
        %v826 = vlaneseq
        %v827 = vshrl.u32 %v826, 7
        %v828 = vsub.s32 %v825, %v827
        %v829 = vrot.slane %v815, %v828
        %v830 = vcombine.low %v795, %v803
        %v831 = vcombine.high %v795, %v803
        %v833 = vunpack.c.l.s4 1983009808
        %v834 = vunpack.c.0.s8 %v833
        %v835 = vlaneseq
        %v836 = vshrl.u32 %v835, 7
        %v837 = vsub.s32 %v834, %v836
        %v838 = vrot.slane %v830, %v837
        %v840 = vunpack.c.l.s4 1983009808
        %v841 = vunpack.c.0.s8 %v840
        %v842 = vlaneseq
        %v843 = vshrl.u32 %v842, 7
        %v844 = vsub.s32 %v841, %v843
        %v845 = vrot.slane %v831, %v844
        %v846 = vcombine.low %v822, %v838
        %v847 = vcombine.high %v822, %v838
        %v849 = vunpack.c.l.s4 1934713408
        %v850 = vunpack.c.0.s8 %v849
        %v851 = vlaneseq
        %v852 = vshrl.u32 %v851, 7
        %v853 = vsub.s32 %v850, %v852
        %v854 = vrot.slane %v846, %v853
        %v856 = vunpack.c.l.s4 1934713408
        %v857 = vunpack.c.0.s8 %v856
        %v858 = vlaneseq
        %v859 = vshrl.u32 %v858, 7
        %v860 = vsub.s32 %v857, %v859
        %v861 = vrot.slane %v847, %v860
        %v862 = vcombine.low %v829, %v845
        %v863 = vcombine.high %v829, %v845
        %v865 = vunpack.c.l.s4 1934713408
        %v866 = vunpack.c.0.s8 %v865
        %v867 = vlaneseq
        %v868 = vshrl.u32 %v867, 7
        %v869 = vsub.s32 %v866, %v868
        %v870 = vrot.slane %v862, %v869
        %v872 = vunpack.c.l.s4 1934713408
        %v873 = vunpack.c.0.s8 %v872
        %v874 = vlaneseq
        %v875 = vshrl.u32 %v874, 7
        %v876 = vsub.s32 %v873, %v875
        %v877 = vrot.slane %v863, %v876
        %v878 = vcombine.high %v854, 0.0
        %v879 = vcombine.high %v861, 0.0
        %v880 = vcombine.high %v870, 0.0
        %v881 = vcombine.high %v877, 0.0
        %v882 = vcombine.low %v793, %v801
        %v883 = vcombine.high %v793, %v801
        %v885 = vunpack.c.l.s4 1983009808
        %v886 = vunpack.c.0.s8 %v885
        %v887 = vlaneseq
        %v888 = vshrl.u32 %v887, 7
        %v889 = vsub.s32 %v886, %v888
        %v890 = vrot.slane %v882, %v889
        %v892 = vunpack.c.l.s4 1983009808
        %v893 = vunpack.c.0.s8 %v892
        %v894 = vlaneseq
        %v895 = vshrl.u32 %v894, 7
        %v896 = vsub.s32 %v893, %v895
        %v897 = vrot.slane %v883, %v896
        %v898 = vcombine.low %v797, %v805
        %v899 = vcombine.high %v797, %v805
        %v901 = vunpack.c.l.s4 1983009808
        %v902 = vunpack.c.0.s8 %v901
        %v903 = vlaneseq
        %v904 = vshrl.u32 %v903, 7
        %v905 = vsub.s32 %v902, %v904
        %v906 = vrot.slane %v898, %v905
        %v908 = vunpack.c.l.s4 1983009808
        %v909 = vunpack.c.0.s8 %v908
        %v910 = vlaneseq
        %v911 = vshrl.u32 %v910, 7
        %v912 = vsub.s32 %v909, %v911
        %v913 = vrot.slane %v899, %v912
        %v914 = vcombine.low %v890, %v906
        %v915 = vcombine.high %v890, %v906
        %v917 = vunpack.c.l.s4 1934713408
        %v918 = vunpack.c.0.s8 %v917
        %v919 = vlaneseq
        %v920 = vshrl.u32 %v919, 7
        %v921 = vsub.s32 %v918, %v920
        %v922 = vrot.slane %v914, %v921
        %v924 = vunpack.c.l.s4 1934713408
        %v925 = vunpack.c.0.s8 %v924
        %v926 = vlaneseq
        %v927 = vshrl.u32 %v926, 7
        %v928 = vsub.s32 %v925, %v927
        %v929 = vrot.slane %v915, %v928
        %v930 = vcombine.low %v897, %v913
        %v931 = vcombine.high %v897, %v913
        %v933 = vunpack.c.l.s4 1934713408
        %v934 = vunpack.c.0.s8 %v933
        %v935 = vlaneseq
        %v936 = vshrl.u32 %v935, 7
        %v937 = vsub.s32 %v934, %v936
        %v938 = vrot.slane %v930, %v937
        %v940 = vunpack.c.l.s4 1934713408
        %v941 = vunpack.c.0.s8 %v940
        %v942 = vlaneseq
        %v943 = vshrl.u32 %v942, 7
        %v944 = vsub.s32 %v941, %v943
        %v945 = vrot.slane %v931, %v944
        %v946 = vcombine.high %v922, 0.0
        %v947 = vcombine.high %v929, 0.0
        %v948 = vcombine.high %v938, 0.0
        %v949 = vcombine.high %v945, 0.0
        %951 = vrot.lane.b32.xlu0 %v878, 16
        %v952 = vpop.permute.xlu0 %951
        %955 = vrot.lane.b32.xlu0 %v861, 32
        %v956 = vpop.permute.xlu0 %955
        %959 = vrot.lane.b32.xlu0 %v879, 48
        %v960 = vpop.permute.xlu0 %959
        %963 = vrot.lane.b32.xlu0 %v870, 64
        %v964 = vpop.permute.xlu0 %963
        %967 = vrot.lane.b32.xlu0 %v880, 80
        %v968 = vpop.permute.xlu0 %967
        %971 = vrot.lane.b32.xlu0 %v877, 96
        %v972 = vpop.permute.xlu0 %971
        %975 = vrot.lane.b32.xlu0 %v881, 112
        %v976 = vpop.permute.xlu0 %975
        %979 = vrot.lane.b32.xlu0 %v946, 16
        %v980 = vpop.permute.xlu0 %979
        %983 = vrot.lane.b32.xlu0 %v929, 32
        %v984 = vpop.permute.xlu0 %983
        %987 = vrot.lane.b32.xlu0 %v947, 48
        %v988 = vpop.permute.xlu0 %987
        %991 = vrot.lane.b32.xlu0 %v938, 64
        %v992 = vpop.permute.xlu0 %991
        %995 = vrot.lane.b32.xlu0 %v948, 80
        %v996 = vpop.permute.xlu0 %995
        %999 = vrot.lane.b32.xlu0 %v945, 96
        %v1000 = vpop.permute.xlu0 %999
        %1003 = vrot.lane.b32.xlu0 %v949, 112
        %v1004 = vpop.permute.xlu0 %1003
        %v1006 = vsel %vm531, %v854, %v952
        %v1007 = vsel %vm533, %v1006, %v956
        %v1008 = vsel %vm535, %v1007, %v960
        %v1009 = vsel %vm537, %v1008, %v964
        %v1010 = vsel %vm539, %v1009, %v968
        %v1011 = vsel %vm541, %v1010, %v972
        %v1012 = vsel %vm543, %v1011, %v976
        %v1013 = vsel %vm531, %v922, %v980
        %v1014 = vsel %vm533, %v1013, %v984
        %v1015 = vsel %vm535, %v1014, %v988
        %v1016 = vsel %vm537, %v1015, %v992
        %v1017 = vsel %vm539, %v1016, %v996
        %v1018 = vsel %vm541, %v1017, %v1000
        %v1019 = vsel %vm543, %v1018, %v1004
        %vm1024 = vcmask 1046528
        %v1025 = vrot.slane %v327, 1
        %v1026 = vrot.slane %v328, 1
        %v1027 = vsel %vm1024, %v1025, %v1026
        %v1028 = vrot.slane %v329, 1
        %v1029 = vsel %vm1024, %v1026, %v1028
        %v1030 = vrot.slane %v330, 1
        %v1031 = vrot.slane %v331, 1
        %v1032 = vsel %vm1024, %v1030, %v1031
        %v1033 = vrot.slane %v332, 1
        %v1034 = vsel %vm1024, %v1031, %v1033
        %v1035 = vrot.slane %v333, 1
        %v1036 = vrot.slane %v334, 1
        %v1037 = vsel %vm1024, %v1035, %v1036
        %v1038 = vrot.slane %v335, 1
        %v1039 = vsel %vm1024, %v1036, %v1038
        %v1040 = vrot.slane %v336, 1
        %v1041 = vrot.slane %v337, 1
        %v1042 = vsel %vm1024, %v1040, %v1041
        %v1043 = vrot.slane %v338, 1
        %v1044 = vsel %vm1024, %v1041, %v1043
        %v1053 = vcombine.low %v1027, %v1037
        %v1054 = vcombine.high %v1027, %v1037
        %v1056 = vunpack.c.l.s4 1983009808
        %v1057 = vunpack.c.0.s8 %v1056
        %v1058 = vlaneseq
        %v1059 = vshrl.u32 %v1058, 7
        %v1060 = vsub.s32 %v1057, %v1059
        %v1061 = vrot.slane %v1053, %v1060
        %v1063 = vunpack.c.l.s4 1983009808
        %v1064 = vunpack.c.0.s8 %v1063
        %v1065 = vlaneseq
        %v1066 = vshrl.u32 %v1065, 7
        %v1067 = vsub.s32 %v1064, %v1066
        %v1068 = vrot.slane %v1054, %v1067
        %v1069 = vcombine.low %v1032, %v1042
        %v1070 = vcombine.high %v1032, %v1042
        %v1072 = vunpack.c.l.s4 1983009808
        %v1073 = vunpack.c.0.s8 %v1072
        %v1074 = vlaneseq
        %v1075 = vshrl.u32 %v1074, 7
        %v1076 = vsub.s32 %v1073, %v1075
        %v1077 = vrot.slane %v1069, %v1076
        %v1079 = vunpack.c.l.s4 1983009808
        %v1080 = vunpack.c.0.s8 %v1079
        %v1081 = vlaneseq
        %v1082 = vshrl.u32 %v1081, 7
        %v1083 = vsub.s32 %v1080, %v1082
        %v1084 = vrot.slane %v1070, %v1083
        %v1085 = vcombine.low %v1061, %v1077
        %v1086 = vcombine.high %v1061, %v1077
        %v1088 = vunpack.c.l.s4 1934713408
        %v1089 = vunpack.c.0.s8 %v1088
        %v1090 = vlaneseq
        %v1091 = vshrl.u32 %v1090, 7
        %v1092 = vsub.s32 %v1089, %v1091
        %v1093 = vrot.slane %v1085, %v1092
        %v1095 = vunpack.c.l.s4 1934713408
        %v1096 = vunpack.c.0.s8 %v1095
        %v1097 = vlaneseq
        %v1098 = vshrl.u32 %v1097, 7
        %v1099 = vsub.s32 %v1096, %v1098
        %v1100 = vrot.slane %v1086, %v1099
        %v1101 = vcombine.low %v1068, %v1084
        %v1102 = vcombine.high %v1068, %v1084
        %v1104 = vunpack.c.l.s4 1934713408
        %v1105 = vunpack.c.0.s8 %v1104
        %v1106 = vlaneseq
        %v1107 = vshrl.u32 %v1106, 7
        %v1108 = vsub.s32 %v1105, %v1107
        %v1109 = vrot.slane %v1101, %v1108
        %v1111 = vunpack.c.l.s4 1934713408
        %v1112 = vunpack.c.0.s8 %v1111
        %v1113 = vlaneseq
        %v1114 = vshrl.u32 %v1113, 7
        %v1115 = vsub.s32 %v1112, %v1114
        %v1116 = vrot.slane %v1102, %v1115
        %v1117 = vcombine.high %v1093, 0.0
        %v1118 = vcombine.high %v1100, 0.0
        %v1119 = vcombine.high %v1109, 0.0
        %v1120 = vcombine.high %v1116, 0.0
        %v1121 = vcombine.low %v1029, %v1039
        %v1122 = vcombine.high %v1029, %v1039
        %v1124 = vunpack.c.l.s4 1983009808
        %v1125 = vunpack.c.0.s8 %v1124
        %v1126 = vlaneseq
        %v1127 = vshrl.u32 %v1126, 7
        %v1128 = vsub.s32 %v1125, %v1127
        %v1129 = vrot.slane %v1121, %v1128
        %v1131 = vunpack.c.l.s4 1983009808
        %v1132 = vunpack.c.0.s8 %v1131
        %v1133 = vlaneseq
        %v1134 = vshrl.u32 %v1133, 7
        %v1135 = vsub.s32 %v1132, %v1134
        %v1136 = vrot.slane %v1122, %v1135
        %v1137 = vcombine.low %v1034, %v1044
        %v1138 = vcombine.high %v1034, %v1044
        %v1140 = vunpack.c.l.s4 1983009808
        %v1141 = vunpack.c.0.s8 %v1140
        %v1142 = vlaneseq
        %v1143 = vshrl.u32 %v1142, 7
        %v1144 = vsub.s32 %v1141, %v1143
        %v1145 = vrot.slane %v1137, %v1144
        %v1147 = vunpack.c.l.s4 1983009808
        %v1148 = vunpack.c.0.s8 %v1147
        %v1149 = vlaneseq
        %v1150 = vshrl.u32 %v1149, 7
        %v1151 = vsub.s32 %v1148, %v1150
        %v1152 = vrot.slane %v1138, %v1151
        %v1153 = vcombine.low %v1129, %v1145
        %v1154 = vcombine.high %v1129, %v1145
        %v1156 = vunpack.c.l.s4 1934713408
        %v1157 = vunpack.c.0.s8 %v1156
        %v1158 = vlaneseq
        %v1159 = vshrl.u32 %v1158, 7
        %v1160 = vsub.s32 %v1157, %v1159
        %v1161 = vrot.slane %v1153, %v1160
        %v1163 = vunpack.c.l.s4 1934713408
        %v1164 = vunpack.c.0.s8 %v1163
        %v1165 = vlaneseq
        %v1166 = vshrl.u32 %v1165, 7
        %v1167 = vsub.s32 %v1164, %v1166
        %v1168 = vrot.slane %v1154, %v1167
        %v1169 = vcombine.low %v1136, %v1152
        %v1170 = vcombine.high %v1136, %v1152
        %v1172 = vunpack.c.l.s4 1934713408
        %v1173 = vunpack.c.0.s8 %v1172
        %v1174 = vlaneseq
        %v1175 = vshrl.u32 %v1174, 7
        %v1176 = vsub.s32 %v1173, %v1175
        %v1177 = vrot.slane %v1169, %v1176
        %v1179 = vunpack.c.l.s4 1934713408
        %v1180 = vunpack.c.0.s8 %v1179
        %v1181 = vlaneseq
        %v1182 = vshrl.u32 %v1181, 7
        %v1183 = vsub.s32 %v1180, %v1182
        %v1184 = vrot.slane %v1170, %v1183
        %v1185 = vcombine.high %v1161, 0.0
        %v1186 = vcombine.high %v1168, 0.0
        %v1187 = vcombine.high %v1177, 0.0
        %v1188 = vcombine.high %v1184, 0.0
        %1190 = vrot.lane.b32.xlu0 %v1117, 16
        %v1191 = vpop.permute.xlu0 %1190
        %1194 = vrot.lane.b32.xlu0 %v1100, 32
        %v1195 = vpop.permute.xlu0 %1194
        %1198 = vrot.lane.b32.xlu0 %v1118, 48
        %v1199 = vpop.permute.xlu0 %1198
        %1202 = vrot.lane.b32.xlu0 %v1109, 64
        %v1203 = vpop.permute.xlu0 %1202
        %1206 = vrot.lane.b32.xlu0 %v1119, 80
        %v1207 = vpop.permute.xlu0 %1206
        %1210 = vrot.lane.b32.xlu0 %v1116, 96
        %v1211 = vpop.permute.xlu0 %1210
        %1214 = vrot.lane.b32.xlu0 %v1120, 112
        %v1215 = vpop.permute.xlu0 %1214
        %1218 = vrot.lane.b32.xlu0 %v1185, 16
        %v1219 = vpop.permute.xlu0 %1218
        %1222 = vrot.lane.b32.xlu0 %v1168, 32
        %v1223 = vpop.permute.xlu0 %1222
        %1226 = vrot.lane.b32.xlu0 %v1186, 48
        %v1227 = vpop.permute.xlu0 %1226
        %1230 = vrot.lane.b32.xlu0 %v1177, 64
        %v1231 = vpop.permute.xlu0 %1230
        %1234 = vrot.lane.b32.xlu0 %v1187, 80
        %v1235 = vpop.permute.xlu0 %1234
        %1238 = vrot.lane.b32.xlu0 %v1184, 96
        %v1239 = vpop.permute.xlu0 %1238
        %1242 = vrot.lane.b32.xlu0 %v1188, 112
        %v1243 = vpop.permute.xlu0 %1242
        %v1245 = vsel %vm531, %v1093, %v1191
        %v1246 = vsel %vm533, %v1245, %v1195
        %v1247 = vsel %vm535, %v1246, %v1199
        %v1248 = vsel %vm537, %v1247, %v1203
        %v1249 = vsel %vm539, %v1248, %v1207
        %v1250 = vsel %vm541, %v1249, %v1211
        %v1251 = vsel %vm543, %v1250, %v1215
        %v1252 = vsel %vm531, %v1161, %v1219
        %v1253 = vsel %vm533, %v1252, %v1223
        %v1254 = vsel %vm535, %v1253, %v1227
        %v1255 = vsel %vm537, %v1254, %v1231
        %v1256 = vsel %vm539, %v1255, %v1235
        %v1257 = vsel %vm541, %v1256, %v1239
        %v1258 = vsel %vm543, %v1257, %v1243
        %1259 = vrot.lane.b32.xlu0 %v1027, 127
        %v1260 = vpop.permute.xlu0 %1259
        %1261 = vrot.lane.b32.xlu0 %v1029, 127
        %v1262 = vpop.permute.xlu0 %1261
        %1263 = vrot.lane.b32.xlu0 %v1032, 127
        %v1264 = vpop.permute.xlu0 %1263
        %1265 = vrot.lane.b32.xlu0 %v1034, 127
        %v1266 = vpop.permute.xlu0 %1265
        %1267 = vrot.lane.b32.xlu0 %v1037, 127
        %v1268 = vpop.permute.xlu0 %1267
        %1269 = vrot.lane.b32.xlu0 %v1039, 127
        %v1270 = vpop.permute.xlu0 %1269
        %1271 = vrot.lane.b32.xlu0 %v1042, 127
        %v1272 = vpop.permute.xlu0 %1271
        %1273 = vrot.lane.b32.xlu0 %v1044, 127
        %v1274 = vpop.permute.xlu0 %1273
        %v1283 = vcombine.low %v1260, %v1268
        %v1284 = vcombine.high %v1260, %v1268
        %v1286 = vunpack.c.l.s4 1983009808
        %v1287 = vunpack.c.0.s8 %v1286
        %v1288 = vlaneseq
        %v1289 = vshrl.u32 %v1288, 7
        %v1290 = vsub.s32 %v1287, %v1289
        %v1291 = vrot.slane %v1283, %v1290
        %v1293 = vunpack.c.l.s4 1983009808
        %v1294 = vunpack.c.0.s8 %v1293
        %v1295 = vlaneseq
        %v1296 = vshrl.u32 %v1295, 7
        %v1297 = vsub.s32 %v1294, %v1296
        %v1298 = vrot.slane %v1284, %v1297
        %v1299 = vcombine.low %v1264, %v1272
        %v1300 = vcombine.high %v1264, %v1272
        %v1302 = vunpack.c.l.s4 1983009808
        %v1303 = vunpack.c.0.s8 %v1302
        %v1304 = vlaneseq
        %v1305 = vshrl.u32 %v1304, 7
        %v1306 = vsub.s32 %v1303, %v1305
        %v1307 = vrot.slane %v1299, %v1306
        %v1309 = vunpack.c.l.s4 1983009808
        %v1310 = vunpack.c.0.s8 %v1309
        %v1311 = vlaneseq
        %v1312 = vshrl.u32 %v1311, 7
        %v1313 = vsub.s32 %v1310, %v1312
        %v1314 = vrot.slane %v1300, %v1313
        %v1315 = vcombine.low %v1291, %v1307
        %v1316 = vcombine.high %v1291, %v1307
        %v1318 = vunpack.c.l.s4 1934713408
        %v1319 = vunpack.c.0.s8 %v1318
        %v1320 = vlaneseq
        %v1321 = vshrl.u32 %v1320, 7
        %v1322 = vsub.s32 %v1319, %v1321
        %v1323 = vrot.slane %v1315, %v1322
        %v1325 = vunpack.c.l.s4 1934713408
        %v1326 = vunpack.c.0.s8 %v1325
        %v1327 = vlaneseq
        %v1328 = vshrl.u32 %v1327, 7
        %v1329 = vsub.s32 %v1326, %v1328
        %v1330 = vrot.slane %v1316, %v1329
        %v1331 = vcombine.low %v1298, %v1314
        %v1332 = vcombine.high %v1298, %v1314
        %v1334 = vunpack.c.l.s4 1934713408
        %v1335 = vunpack.c.0.s8 %v1334
        %v1336 = vlaneseq
        %v1337 = vshrl.u32 %v1336, 7
        %v1338 = vsub.s32 %v1335, %v1337
        %v1339 = vrot.slane %v1331, %v1338
        %v1341 = vunpack.c.l.s4 1934713408
        %v1342 = vunpack.c.0.s8 %v1341
        %v1343 = vlaneseq
        %v1344 = vshrl.u32 %v1343, 7
        %v1345 = vsub.s32 %v1342, %v1344
        %v1346 = vrot.slane %v1332, %v1345
        %v1347 = vcombine.high %v1323, 0.0
        %v1348 = vcombine.high %v1330, 0.0
        %v1349 = vcombine.high %v1339, 0.0
        %v1350 = vcombine.high %v1346, 0.0
        %v1351 = vcombine.low %v1262, %v1270
        %v1352 = vcombine.high %v1262, %v1270
        %v1354 = vunpack.c.l.s4 1983009808
        %v1355 = vunpack.c.0.s8 %v1354
        %v1356 = vlaneseq
        %v1357 = vshrl.u32 %v1356, 7
        %v1358 = vsub.s32 %v1355, %v1357
        %v1359 = vrot.slane %v1351, %v1358
        %v1361 = vunpack.c.l.s4 1983009808
        %v1362 = vunpack.c.0.s8 %v1361
        %v1363 = vlaneseq
        %v1364 = vshrl.u32 %v1363, 7
        %v1365 = vsub.s32 %v1362, %v1364
        %v1366 = vrot.slane %v1352, %v1365
        %v1367 = vcombine.low %v1266, %v1274
        %v1368 = vcombine.high %v1266, %v1274
        %v1370 = vunpack.c.l.s4 1983009808
        %v1371 = vunpack.c.0.s8 %v1370
        %v1372 = vlaneseq
        %v1373 = vshrl.u32 %v1372, 7
        %v1374 = vsub.s32 %v1371, %v1373
        %v1375 = vrot.slane %v1367, %v1374
        %v1377 = vunpack.c.l.s4 1983009808
        %v1378 = vunpack.c.0.s8 %v1377
        %v1379 = vlaneseq
        %v1380 = vshrl.u32 %v1379, 7
        %v1381 = vsub.s32 %v1378, %v1380
        %v1382 = vrot.slane %v1368, %v1381
        %v1383 = vcombine.low %v1359, %v1375
        %v1384 = vcombine.high %v1359, %v1375
        %v1386 = vunpack.c.l.s4 1934713408
        %v1387 = vunpack.c.0.s8 %v1386
        %v1388 = vlaneseq
        %v1389 = vshrl.u32 %v1388, 7
        %v1390 = vsub.s32 %v1387, %v1389
        %v1391 = vrot.slane %v1383, %v1390
        %v1393 = vunpack.c.l.s4 1934713408
        %v1394 = vunpack.c.0.s8 %v1393
        %v1395 = vlaneseq
        %v1396 = vshrl.u32 %v1395, 7
        %v1397 = vsub.s32 %v1394, %v1396
        %v1398 = vrot.slane %v1384, %v1397
        %v1399 = vcombine.low %v1366, %v1382
        %v1400 = vcombine.high %v1366, %v1382
        %v1402 = vunpack.c.l.s4 1934713408
        %v1403 = vunpack.c.0.s8 %v1402
        %v1404 = vlaneseq
        %v1405 = vshrl.u32 %v1404, 7
        %v1406 = vsub.s32 %v1403, %v1405
        %v1407 = vrot.slane %v1399, %v1406
        %v1409 = vunpack.c.l.s4 1934713408
        %v1410 = vunpack.c.0.s8 %v1409
        %v1411 = vlaneseq
        %v1412 = vshrl.u32 %v1411, 7
        %v1413 = vsub.s32 %v1410, %v1412
        %v1414 = vrot.slane %v1400, %v1413
        %v1415 = vcombine.high %v1391, 0.0
        %v1416 = vcombine.high %v1398, 0.0
        %v1417 = vcombine.high %v1407, 0.0
        %v1418 = vcombine.high %v1414, 0.0
        %1420 = vrot.lane.b32.xlu0 %v1347, 16
        %v1421 = vpop.permute.xlu0 %1420
        %1424 = vrot.lane.b32.xlu0 %v1330, 32
        %v1425 = vpop.permute.xlu0 %1424
        %1428 = vrot.lane.b32.xlu0 %v1348, 48
        %v1429 = vpop.permute.xlu0 %1428
        %1432 = vrot.lane.b32.xlu0 %v1339, 64
        %v1433 = vpop.permute.xlu0 %1432
        %1436 = vrot.lane.b32.xlu0 %v1349, 80
        %v1437 = vpop.permute.xlu0 %1436
        %1440 = vrot.lane.b32.xlu0 %v1346, 96
        %v1441 = vpop.permute.xlu0 %1440
        %1444 = vrot.lane.b32.xlu0 %v1350, 112
        %v1445 = vpop.permute.xlu0 %1444
        %1448 = vrot.lane.b32.xlu0 %v1415, 16
        %v1449 = vpop.permute.xlu0 %1448
        %1452 = vrot.lane.b32.xlu0 %v1398, 32
        %v1453 = vpop.permute.xlu0 %1452
        %1456 = vrot.lane.b32.xlu0 %v1416, 48
        %v1457 = vpop.permute.xlu0 %1456
        %1460 = vrot.lane.b32.xlu0 %v1407, 64
        %v1461 = vpop.permute.xlu0 %1460
        %1464 = vrot.lane.b32.xlu0 %v1417, 80
        %v1465 = vpop.permute.xlu0 %1464
        %1468 = vrot.lane.b32.xlu0 %v1414, 96
        %v1469 = vpop.permute.xlu0 %1468
        %1472 = vrot.lane.b32.xlu0 %v1418, 112
        %v1473 = vpop.permute.xlu0 %1472
        %v1475 = vsel %vm531, %v1323, %v1421
        %v1476 = vsel %vm533, %v1475, %v1425
        %v1477 = vsel %vm535, %v1476, %v1429
        %v1478 = vsel %vm537, %v1477, %v1433
        %v1479 = vsel %vm539, %v1478, %v1437
        %v1480 = vsel %vm541, %v1479, %v1441
        %v1481 = vsel %vm543, %v1480, %v1445
        %v1482 = vsel %vm531, %v1391, %v1449
        %v1483 = vsel %vm533, %v1482, %v1453
        %v1484 = vsel %vm535, %v1483, %v1457
        %v1485 = vsel %vm537, %v1484, %v1461
        %v1486 = vsel %vm539, %v1485, %v1465
        %v1487 = vsel %vm541, %v1486, %v1469
        %v1488 = vsel %vm543, %v1487, %v1473
        %1489 = vrot.lane.b32.xlu0 %v1027, 126
        %v1490 = vpop.permute.xlu0 %1489
        %1491 = vrot.lane.b32.xlu0 %v1029, 126
        %v1492 = vpop.permute.xlu0 %1491
        %1493 = vrot.lane.b32.xlu0 %v1032, 126
        %v1494 = vpop.permute.xlu0 %1493
        %1495 = vrot.lane.b32.xlu0 %v1034, 126
        %v1496 = vpop.permute.xlu0 %1495
        %1497 = vrot.lane.b32.xlu0 %v1037, 126
        %v1498 = vpop.permute.xlu0 %1497
        %1499 = vrot.lane.b32.xlu0 %v1039, 126
        %v1500 = vpop.permute.xlu0 %1499
        %1501 = vrot.lane.b32.xlu0 %v1042, 126
        %v1502 = vpop.permute.xlu0 %1501
        %1503 = vrot.lane.b32.xlu0 %v1044, 126
        %v1504 = vpop.permute.xlu0 %1503
        %v1513 = vcombine.low %v1490, %v1498
        %v1514 = vcombine.high %v1490, %v1498
        %v1516 = vunpack.c.l.s4 1983009808
        %v1517 = vunpack.c.0.s8 %v1516
        %v1518 = vlaneseq
        %v1519 = vshrl.u32 %v1518, 7
        %v1520 = vsub.s32 %v1517, %v1519
        %v1521 = vrot.slane %v1513, %v1520
        %v1523 = vunpack.c.l.s4 1983009808
        %v1524 = vunpack.c.0.s8 %v1523
        %v1525 = vlaneseq
        %v1526 = vshrl.u32 %v1525, 7
        %v1527 = vsub.s32 %v1524, %v1526
        %v1528 = vrot.slane %v1514, %v1527
        %v1529 = vcombine.low %v1494, %v1502
        %v1530 = vcombine.high %v1494, %v1502
        %v1532 = vunpack.c.l.s4 1983009808
        %v1533 = vunpack.c.0.s8 %v1532
        %v1534 = vlaneseq
        %v1535 = vshrl.u32 %v1534, 7
        %v1536 = vsub.s32 %v1533, %v1535
        %v1537 = vrot.slane %v1529, %v1536
        %v1539 = vunpack.c.l.s4 1983009808
        %v1540 = vunpack.c.0.s8 %v1539
        %v1541 = vlaneseq
        %v1542 = vshrl.u32 %v1541, 7
        %v1543 = vsub.s32 %v1540, %v1542
        %v1544 = vrot.slane %v1530, %v1543
        %v1545 = vcombine.low %v1521, %v1537
        %v1546 = vcombine.high %v1521, %v1537
        %v1548 = vunpack.c.l.s4 1934713408
        %v1549 = vunpack.c.0.s8 %v1548
        %v1550 = vlaneseq
        %v1551 = vshrl.u32 %v1550, 7
        %v1552 = vsub.s32 %v1549, %v1551
        %v1553 = vrot.slane %v1545, %v1552
        %v1555 = vunpack.c.l.s4 1934713408
        %v1556 = vunpack.c.0.s8 %v1555
        %v1557 = vlaneseq
        %v1558 = vshrl.u32 %v1557, 7
        %v1559 = vsub.s32 %v1556, %v1558
        %v1560 = vrot.slane %v1546, %v1559
        %v1561 = vcombine.low %v1528, %v1544
        %v1562 = vcombine.high %v1528, %v1544
        %v1564 = vunpack.c.l.s4 1934713408
        %v1565 = vunpack.c.0.s8 %v1564
        %v1566 = vlaneseq
        %v1567 = vshrl.u32 %v1566, 7
        %v1568 = vsub.s32 %v1565, %v1567
        %v1569 = vrot.slane %v1561, %v1568
        %v1571 = vunpack.c.l.s4 1934713408
        %v1572 = vunpack.c.0.s8 %v1571
        %v1573 = vlaneseq
        %v1574 = vshrl.u32 %v1573, 7
        %v1575 = vsub.s32 %v1572, %v1574
        %v1576 = vrot.slane %v1562, %v1575
        %v1577 = vcombine.high %v1553, 0.0
        %v1578 = vcombine.high %v1560, 0.0
        %v1579 = vcombine.high %v1569, 0.0
        %v1580 = vcombine.high %v1576, 0.0
        %v1581 = vcombine.low %v1492, %v1500
        %v1582 = vcombine.high %v1492, %v1500
        %v1584 = vunpack.c.l.s4 1983009808
        %v1585 = vunpack.c.0.s8 %v1584
        %v1586 = vlaneseq
        %v1587 = vshrl.u32 %v1586, 7
        %v1588 = vsub.s32 %v1585, %v1587
        %v1589 = vrot.slane %v1581, %v1588
        %v1591 = vunpack.c.l.s4 1983009808
        %v1592 = vunpack.c.0.s8 %v1591
        %v1593 = vlaneseq
        %v1594 = vshrl.u32 %v1593, 7
        %v1595 = vsub.s32 %v1592, %v1594
        %v1596 = vrot.slane %v1582, %v1595
        %v1597 = vcombine.low %v1496, %v1504
        %v1598 = vcombine.high %v1496, %v1504
        %v1600 = vunpack.c.l.s4 1983009808
        %v1601 = vunpack.c.0.s8 %v1600
        %v1602 = vlaneseq
        %v1603 = vshrl.u32 %v1602, 7
        %v1604 = vsub.s32 %v1601, %v1603
        %v1605 = vrot.slane %v1597, %v1604
        %v1607 = vunpack.c.l.s4 1983009808
        %v1608 = vunpack.c.0.s8 %v1607
        %v1609 = vlaneseq
        %v1610 = vshrl.u32 %v1609, 7
        %v1611 = vsub.s32 %v1608, %v1610
        %v1612 = vrot.slane %v1598, %v1611
        %v1613 = vcombine.low %v1589, %v1605
        %v1614 = vcombine.high %v1589, %v1605
        %v1616 = vunpack.c.l.s4 1934713408
        %v1617 = vunpack.c.0.s8 %v1616
        %v1618 = vlaneseq
        %v1619 = vshrl.u32 %v1618, 7
        %v1620 = vsub.s32 %v1617, %v1619
        %v1621 = vrot.slane %v1613, %v1620
        %v1623 = vunpack.c.l.s4 1934713408
        %v1624 = vunpack.c.0.s8 %v1623
        %v1625 = vlaneseq
        %v1626 = vshrl.u32 %v1625, 7
        %v1627 = vsub.s32 %v1624, %v1626
        %v1628 = vrot.slane %v1614, %v1627
        %v1629 = vcombine.low %v1596, %v1612
        %v1630 = vcombine.high %v1596, %v1612
        %v1632 = vunpack.c.l.s4 1934713408
        %v1633 = vunpack.c.0.s8 %v1632
        %v1634 = vlaneseq
        %v1635 = vshrl.u32 %v1634, 7
        %v1636 = vsub.s32 %v1633, %v1635
        %v1637 = vrot.slane %v1629, %v1636
        %v1639 = vunpack.c.l.s4 1934713408
        %v1640 = vunpack.c.0.s8 %v1639
        %v1641 = vlaneseq
        %v1642 = vshrl.u32 %v1641, 7
        %v1643 = vsub.s32 %v1640, %v1642
        %v1644 = vrot.slane %v1630, %v1643
        %v1645 = vcombine.high %v1621, 0.0
        %v1646 = vcombine.high %v1628, 0.0
        %v1647 = vcombine.high %v1637, 0.0
        %v1648 = vcombine.high %v1644, 0.0
        %1650 = vrot.lane.b32.xlu0 %v1577, 16
        %v1651 = vpop.permute.xlu0 %1650
        %1654 = vrot.lane.b32.xlu0 %v1560, 32
        %v1655 = vpop.permute.xlu0 %1654
        %1658 = vrot.lane.b32.xlu0 %v1578, 48
        %v1659 = vpop.permute.xlu0 %1658
        %1662 = vrot.lane.b32.xlu0 %v1569, 64
        %v1663 = vpop.permute.xlu0 %1662
        %1666 = vrot.lane.b32.xlu0 %v1579, 80
        %v1667 = vpop.permute.xlu0 %1666
        %1670 = vrot.lane.b32.xlu0 %v1576, 96
        %v1671 = vpop.permute.xlu0 %1670
        %1674 = vrot.lane.b32.xlu0 %v1580, 112
        %v1675 = vpop.permute.xlu0 %1674
        %1678 = vrot.lane.b32.xlu0 %v1645, 16
        %v1679 = vpop.permute.xlu0 %1678
        %1682 = vrot.lane.b32.xlu0 %v1628, 32
        %v1683 = vpop.permute.xlu0 %1682
        %1686 = vrot.lane.b32.xlu0 %v1646, 48
        %v1687 = vpop.permute.xlu0 %1686
        %1690 = vrot.lane.b32.xlu0 %v1637, 64
        %v1691 = vpop.permute.xlu0 %1690
        %1694 = vrot.lane.b32.xlu0 %v1647, 80
        %v1695 = vpop.permute.xlu0 %1694
        %1698 = vrot.lane.b32.xlu0 %v1644, 96
        %v1699 = vpop.permute.xlu0 %1698
        %1702 = vrot.lane.b32.xlu0 %v1648, 112
        %v1703 = vpop.permute.xlu0 %1702
        %v1705 = vsel %vm531, %v1553, %v1651
        %v1706 = vsel %vm533, %v1705, %v1655
        %v1707 = vsel %vm535, %v1706, %v1659
        %v1708 = vsel %vm537, %v1707, %v1663
        %v1709 = vsel %vm539, %v1708, %v1667
        %v1710 = vsel %vm541, %v1709, %v1671
        %v1711 = vsel %vm543, %v1710, %v1675
        %v1712 = vsel %vm531, %v1621, %v1679
        %v1713 = vsel %vm533, %v1712, %v1683
        %v1714 = vsel %vm535, %v1713, %v1687
        %v1715 = vsel %vm537, %v1714, %v1691
        %v1716 = vsel %vm539, %v1715, %v1695
        %v1717 = vsel %vm541, %v1716, %v1699
        %v1718 = vsel %vm543, %v1717, %v1703
        %vm1719 = vcmask 1045504
        %v1720 = vrot.slane %v327, 2
        %v1721 = vrot.slane %v328, 2
        %v1722 = vsel %vm1719, %v1720, %v1721
        %v1723 = vrot.slane %v329, 2
        %v1724 = vsel %vm1719, %v1721, %v1723
        %v1725 = vrot.slane %v330, 2
        %v1726 = vrot.slane %v331, 2
        %v1727 = vsel %vm1719, %v1725, %v1726
        %v1728 = vrot.slane %v332, 2
        %v1729 = vsel %vm1719, %v1726, %v1728
        %v1730 = vrot.slane %v333, 2
        %v1731 = vrot.slane %v334, 2
        %v1732 = vsel %vm1719, %v1730, %v1731
        %v1733 = vrot.slane %v335, 2
        %v1734 = vsel %vm1719, %v1731, %v1733
        %v1735 = vrot.slane %v336, 2
        %v1736 = vrot.slane %v337, 2
        %v1737 = vsel %vm1719, %v1735, %v1736
        %v1738 = vrot.slane %v338, 2
        %v1739 = vsel %vm1719, %v1736, %v1738
        %v1748 = vcombine.low %v1722, %v1732
        %v1749 = vcombine.high %v1722, %v1732
        %v1751 = vunpack.c.l.s4 1983009808
        %v1752 = vunpack.c.0.s8 %v1751
        %v1753 = vlaneseq
        %v1754 = vshrl.u32 %v1753, 7
        %v1755 = vsub.s32 %v1752, %v1754
        %v1756 = vrot.slane %v1748, %v1755
        %v1758 = vunpack.c.l.s4 1983009808
        %v1759 = vunpack.c.0.s8 %v1758
        %v1760 = vlaneseq
        %v1761 = vshrl.u32 %v1760, 7
        %v1762 = vsub.s32 %v1759, %v1761
        %v1763 = vrot.slane %v1749, %v1762
        %v1764 = vcombine.low %v1727, %v1737
        %v1765 = vcombine.high %v1727, %v1737
        %v1767 = vunpack.c.l.s4 1983009808
        %v1768 = vunpack.c.0.s8 %v1767
        %v1769 = vlaneseq
        %v1770 = vshrl.u32 %v1769, 7
        %v1771 = vsub.s32 %v1768, %v1770
        %v1772 = vrot.slane %v1764, %v1771
        %v1774 = vunpack.c.l.s4 1983009808
        %v1775 = vunpack.c.0.s8 %v1774
        %v1776 = vlaneseq
        %v1777 = vshrl.u32 %v1776, 7
        %v1778 = vsub.s32 %v1775, %v1777
        %v1779 = vrot.slane %v1765, %v1778
        %v1780 = vcombine.low %v1756, %v1772
        %v1781 = vcombine.high %v1756, %v1772
        %v1783 = vunpack.c.l.s4 1934713408
        %v1784 = vunpack.c.0.s8 %v1783
        %v1785 = vlaneseq
        %v1786 = vshrl.u32 %v1785, 7
        %v1787 = vsub.s32 %v1784, %v1786
        %v1788 = vrot.slane %v1780, %v1787
        %v1790 = vunpack.c.l.s4 1934713408
        %v1791 = vunpack.c.0.s8 %v1790
        %v1792 = vlaneseq
        %v1793 = vshrl.u32 %v1792, 7
        %v1794 = vsub.s32 %v1791, %v1793
        %v1795 = vrot.slane %v1781, %v1794
        %v1796 = vcombine.low %v1763, %v1779
        %v1797 = vcombine.high %v1763, %v1779
        %v1799 = vunpack.c.l.s4 1934713408
        %v1800 = vunpack.c.0.s8 %v1799
        %v1801 = vlaneseq
        %v1802 = vshrl.u32 %v1801, 7
        %v1803 = vsub.s32 %v1800, %v1802
        %v1804 = vrot.slane %v1796, %v1803
        %v1806 = vunpack.c.l.s4 1934713408
        %v1807 = vunpack.c.0.s8 %v1806
        %v1808 = vlaneseq
        %v1809 = vshrl.u32 %v1808, 7
        %v1810 = vsub.s32 %v1807, %v1809
        %v1811 = vrot.slane %v1797, %v1810
        %v1812 = vcombine.high %v1788, 0.0
        %v1813 = vcombine.high %v1795, 0.0
        %v1814 = vcombine.high %v1804, 0.0
        %v1815 = vcombine.high %v1811, 0.0
        %v1816 = vcombine.low %v1724, %v1734
        %v1817 = vcombine.high %v1724, %v1734
        %v1819 = vunpack.c.l.s4 1983009808
        %v1820 = vunpack.c.0.s8 %v1819
        %v1821 = vlaneseq
        %v1822 = vshrl.u32 %v1821, 7
        %v1823 = vsub.s32 %v1820, %v1822
        %v1824 = vrot.slane %v1816, %v1823
        %v1826 = vunpack.c.l.s4 1983009808
        %v1827 = vunpack.c.0.s8 %v1826
        %v1828 = vlaneseq
        %v1829 = vshrl.u32 %v1828, 7
        %v1830 = vsub.s32 %v1827, %v1829
        %v1831 = vrot.slane %v1817, %v1830
        %v1832 = vcombine.low %v1729, %v1739
        %v1833 = vcombine.high %v1729, %v1739
        %v1835 = vunpack.c.l.s4 1983009808
        %v1836 = vunpack.c.0.s8 %v1835
        %v1837 = vlaneseq
        %v1838 = vshrl.u32 %v1837, 7
        %v1839 = vsub.s32 %v1836, %v1838
        %v1840 = vrot.slane %v1832, %v1839
        %v1842 = vunpack.c.l.s4 1983009808
        %v1843 = vunpack.c.0.s8 %v1842
        %v1844 = vlaneseq
        %v1845 = vshrl.u32 %v1844, 7
        %v1846 = vsub.s32 %v1843, %v1845
        %v1847 = vrot.slane %v1833, %v1846
        %v1848 = vcombine.low %v1824, %v1840
        %v1849 = vcombine.high %v1824, %v1840
        %v1851 = vunpack.c.l.s4 1934713408
        %v1852 = vunpack.c.0.s8 %v1851
        %v1853 = vlaneseq
        %v1854 = vshrl.u32 %v1853, 7
        %v1855 = vsub.s32 %v1852, %v1854
        %v1856 = vrot.slane %v1848, %v1855
        %v1858 = vunpack.c.l.s4 1934713408
        %v1859 = vunpack.c.0.s8 %v1858
        %v1860 = vlaneseq
        %v1861 = vshrl.u32 %v1860, 7
        %v1862 = vsub.s32 %v1859, %v1861
        %v1863 = vrot.slane %v1849, %v1862
        %v1864 = vcombine.low %v1831, %v1847
        %v1865 = vcombine.high %v1831, %v1847
        %v1867 = vunpack.c.l.s4 1934713408
        %v1868 = vunpack.c.0.s8 %v1867
        %v1869 = vlaneseq
        %v1870 = vshrl.u32 %v1869, 7
        %v1871 = vsub.s32 %v1868, %v1870
        %v1872 = vrot.slane %v1864, %v1871
        %v1874 = vunpack.c.l.s4 1934713408
        %v1875 = vunpack.c.0.s8 %v1874
        %v1876 = vlaneseq
        %v1877 = vshrl.u32 %v1876, 7
        %v1878 = vsub.s32 %v1875, %v1877
        %v1879 = vrot.slane %v1865, %v1878
        %v1880 = vcombine.high %v1856, 0.0
        %v1881 = vcombine.high %v1863, 0.0
        %v1882 = vcombine.high %v1872, 0.0
        %v1883 = vcombine.high %v1879, 0.0
        %1885 = vrot.lane.b32.xlu0 %v1812, 16
        %v1886 = vpop.permute.xlu0 %1885
        %1889 = vrot.lane.b32.xlu0 %v1795, 32
        %v1890 = vpop.permute.xlu0 %1889
        %1893 = vrot.lane.b32.xlu0 %v1813, 48
        %v1894 = vpop.permute.xlu0 %1893
        %1897 = vrot.lane.b32.xlu0 %v1804, 64
        %v1898 = vpop.permute.xlu0 %1897
        %1901 = vrot.lane.b32.xlu0 %v1814, 80
        %v1902 = vpop.permute.xlu0 %1901
        %1905 = vrot.lane.b32.xlu0 %v1811, 96
        %v1906 = vpop.permute.xlu0 %1905
        %1909 = vrot.lane.b32.xlu0 %v1815, 112
        %v1910 = vpop.permute.xlu0 %1909
        %1913 = vrot.lane.b32.xlu0 %v1880, 16
        %v1914 = vpop.permute.xlu0 %1913
        %1917 = vrot.lane.b32.xlu0 %v1863, 32
        %v1918 = vpop.permute.xlu0 %1917
        %1921 = vrot.lane.b32.xlu0 %v1881, 48
        %v1922 = vpop.permute.xlu0 %1921
        %1925 = vrot.lane.b32.xlu0 %v1872, 64
        %v1926 = vpop.permute.xlu0 %1925
        %1929 = vrot.lane.b32.xlu0 %v1882, 80
        %v1930 = vpop.permute.xlu0 %1929
        %1933 = vrot.lane.b32.xlu0 %v1879, 96
        %v1934 = vpop.permute.xlu0 %1933
        %1937 = vrot.lane.b32.xlu0 %v1883, 112
        %v1938 = vpop.permute.xlu0 %1937
        %v1940 = vsel %vm531, %v1788, %v1886
        %v1941 = vsel %vm533, %v1940, %v1890
        %v1942 = vsel %vm535, %v1941, %v1894
        %v1943 = vsel %vm537, %v1942, %v1898
        %v1944 = vsel %vm539, %v1943, %v1902
        %v1945 = vsel %vm541, %v1944, %v1906
        %v1946 = vsel %vm543, %v1945, %v1910
        %v1947 = vsel %vm531, %v1856, %v1914
        %v1948 = vsel %vm533, %v1947, %v1918
        %v1949 = vsel %vm535, %v1948, %v1922
        %v1950 = vsel %vm537, %v1949, %v1926
        %v1951 = vsel %vm539, %v1950, %v1930
        %v1952 = vsel %vm541, %v1951, %v1934
        %v1953 = vsel %vm543, %v1952, %v1938
        %1954 = vrot.lane.b32.xlu0 %v1722, 127
        %v1955 = vpop.permute.xlu0 %1954
        %1956 = vrot.lane.b32.xlu0 %v1724, 127
        %v1957 = vpop.permute.xlu0 %1956
        %1958 = vrot.lane.b32.xlu0 %v1727, 127
        %v1959 = vpop.permute.xlu0 %1958
        %1960 = vrot.lane.b32.xlu0 %v1729, 127
        %v1961 = vpop.permute.xlu0 %1960
        %1962 = vrot.lane.b32.xlu0 %v1732, 127
        %v1963 = vpop.permute.xlu0 %1962
        %1964 = vrot.lane.b32.xlu0 %v1734, 127
        %v1965 = vpop.permute.xlu0 %1964
        %1966 = vrot.lane.b32.xlu0 %v1737, 127
        %v1967 = vpop.permute.xlu0 %1966
        %1968 = vrot.lane.b32.xlu0 %v1739, 127
        %v1969 = vpop.permute.xlu0 %1968
        %v1978 = vcombine.low %v1955, %v1963
        %v1979 = vcombine.high %v1955, %v1963
        %v1981 = vunpack.c.l.s4 1983009808
        %v1982 = vunpack.c.0.s8 %v1981
        %v1983 = vlaneseq
        %v1984 = vshrl.u32 %v1983, 7
        %v1985 = vsub.s32 %v1982, %v1984
        %v1986 = vrot.slane %v1978, %v1985
        %v1988 = vunpack.c.l.s4 1983009808
        %v1989 = vunpack.c.0.s8 %v1988
        %v1990 = vlaneseq
        %v1991 = vshrl.u32 %v1990, 7
        %v1992 = vsub.s32 %v1989, %v1991
        %v1993 = vrot.slane %v1979, %v1992
        %v1994 = vcombine.low %v1959, %v1967
        %v1995 = vcombine.high %v1959, %v1967
        %v1997 = vunpack.c.l.s4 1983009808
        %v1998 = vunpack.c.0.s8 %v1997
        %v1999 = vlaneseq
        %v2000 = vshrl.u32 %v1999, 7
        %v2001 = vsub.s32 %v1998, %v2000
        %v2002 = vrot.slane %v1994, %v2001
        %v2004 = vunpack.c.l.s4 1983009808
        %v2005 = vunpack.c.0.s8 %v2004
        %v2006 = vlaneseq
        %v2007 = vshrl.u32 %v2006, 7
        %v2008 = vsub.s32 %v2005, %v2007
        %v2009 = vrot.slane %v1995, %v2008
        %v2010 = vcombine.low %v1986, %v2002
        %v2011 = vcombine.high %v1986, %v2002
        %v2013 = vunpack.c.l.s4 1934713408
        %v2014 = vunpack.c.0.s8 %v2013
        %v2015 = vlaneseq
        %v2016 = vshrl.u32 %v2015, 7
        %v2017 = vsub.s32 %v2014, %v2016
        %v2018 = vrot.slane %v2010, %v2017
        %v2020 = vunpack.c.l.s4 1934713408
        %v2021 = vunpack.c.0.s8 %v2020
        %v2022 = vlaneseq
        %v2023 = vshrl.u32 %v2022, 7
        %v2024 = vsub.s32 %v2021, %v2023
        %v2025 = vrot.slane %v2011, %v2024
        %v2026 = vcombine.low %v1993, %v2009
        %v2027 = vcombine.high %v1993, %v2009
        %v2029 = vunpack.c.l.s4 1934713408
        %v2030 = vunpack.c.0.s8 %v2029
        %v2031 = vlaneseq
        %v2032 = vshrl.u32 %v2031, 7
        %v2033 = vsub.s32 %v2030, %v2032
        %v2034 = vrot.slane %v2026, %v2033
        %v2036 = vunpack.c.l.s4 1934713408
        %v2037 = vunpack.c.0.s8 %v2036
        %v2038 = vlaneseq
        %v2039 = vshrl.u32 %v2038, 7
        %v2040 = vsub.s32 %v2037, %v2039
        %v2041 = vrot.slane %v2027, %v2040
        %v2042 = vcombine.high %v2018, 0.0
        %v2043 = vcombine.high %v2025, 0.0
        %v2044 = vcombine.high %v2034, 0.0
        %v2045 = vcombine.high %v2041, 0.0
        %v2046 = vcombine.low %v1957, %v1965
        %v2047 = vcombine.high %v1957, %v1965
        %v2049 = vunpack.c.l.s4 1983009808
        %v2050 = vunpack.c.0.s8 %v2049
        %v2051 = vlaneseq
        %v2052 = vshrl.u32 %v2051, 7
        %v2053 = vsub.s32 %v2050, %v2052
        %v2054 = vrot.slane %v2046, %v2053
        %v2056 = vunpack.c.l.s4 1983009808
        %v2057 = vunpack.c.0.s8 %v2056
        %v2058 = vlaneseq
        %v2059 = vshrl.u32 %v2058, 7
        %v2060 = vsub.s32 %v2057, %v2059
        %v2061 = vrot.slane %v2047, %v2060
        %v2062 = vcombine.low %v1961, %v1969
        %v2063 = vcombine.high %v1961, %v1969
        %v2065 = vunpack.c.l.s4 1983009808
        %v2066 = vunpack.c.0.s8 %v2065
        %v2067 = vlaneseq
        %v2068 = vshrl.u32 %v2067, 7
        %v2069 = vsub.s32 %v2066, %v2068
        %v2070 = vrot.slane %v2062, %v2069
        %v2072 = vunpack.c.l.s4 1983009808
        %v2073 = vunpack.c.0.s8 %v2072
        %v2074 = vlaneseq
        %v2075 = vshrl.u32 %v2074, 7
        %v2076 = vsub.s32 %v2073, %v2075
        %v2077 = vrot.slane %v2063, %v2076
        %v2078 = vcombine.low %v2054, %v2070
        %v2079 = vcombine.high %v2054, %v2070
        %v2081 = vunpack.c.l.s4 1934713408
        %v2082 = vunpack.c.0.s8 %v2081
        %v2083 = vlaneseq
        %v2084 = vshrl.u32 %v2083, 7
        %v2085 = vsub.s32 %v2082, %v2084
        %v2086 = vrot.slane %v2078, %v2085
        %v2088 = vunpack.c.l.s4 1934713408
        %v2089 = vunpack.c.0.s8 %v2088
        %v2090 = vlaneseq
        %v2091 = vshrl.u32 %v2090, 7
        %v2092 = vsub.s32 %v2089, %v2091
        %v2093 = vrot.slane %v2079, %v2092
        %v2094 = vcombine.low %v2061, %v2077
        %v2095 = vcombine.high %v2061, %v2077
        %v2097 = vunpack.c.l.s4 1934713408
        %v2098 = vunpack.c.0.s8 %v2097
        %v2099 = vlaneseq
        %v2100 = vshrl.u32 %v2099, 7
        %v2101 = vsub.s32 %v2098, %v2100
        %v2102 = vrot.slane %v2094, %v2101
        %v2104 = vunpack.c.l.s4 1934713408
        %v2105 = vunpack.c.0.s8 %v2104
        %v2106 = vlaneseq
        %v2107 = vshrl.u32 %v2106, 7
        %v2108 = vsub.s32 %v2105, %v2107
        %v2109 = vrot.slane %v2095, %v2108
        %v2110 = vcombine.high %v2086, 0.0
        %v2111 = vcombine.high %v2093, 0.0
        %v2112 = vcombine.high %v2102, 0.0
        %v2113 = vcombine.high %v2109, 0.0
        %2115 = vrot.lane.b32.xlu0 %v2042, 16
        %v2116 = vpop.permute.xlu0 %2115
        %2119 = vrot.lane.b32.xlu0 %v2025, 32
        %v2120 = vpop.permute.xlu0 %2119
        %2123 = vrot.lane.b32.xlu0 %v2043, 48
        %v2124 = vpop.permute.xlu0 %2123
        %2127 = vrot.lane.b32.xlu0 %v2034, 64
        %v2128 = vpop.permute.xlu0 %2127
        %2131 = vrot.lane.b32.xlu0 %v2044, 80
        %v2132 = vpop.permute.xlu0 %2131
        %2135 = vrot.lane.b32.xlu0 %v2041, 96
        %v2136 = vpop.permute.xlu0 %2135
        %2139 = vrot.lane.b32.xlu0 %v2045, 112
        %v2140 = vpop.permute.xlu0 %2139
        %2143 = vrot.lane.b32.xlu0 %v2110, 16
        %v2144 = vpop.permute.xlu0 %2143
        %2147 = vrot.lane.b32.xlu0 %v2093, 32
        %v2148 = vpop.permute.xlu0 %2147
        %2151 = vrot.lane.b32.xlu0 %v2111, 48
        %v2152 = vpop.permute.xlu0 %2151
        %2155 = vrot.lane.b32.xlu0 %v2102, 64
        %v2156 = vpop.permute.xlu0 %2155
        %2159 = vrot.lane.b32.xlu0 %v2112, 80
        %v2160 = vpop.permute.xlu0 %2159
        %2163 = vrot.lane.b32.xlu0 %v2109, 96
        %v2164 = vpop.permute.xlu0 %2163
        %2167 = vrot.lane.b32.xlu0 %v2113, 112
        %v2168 = vpop.permute.xlu0 %2167
        %v2170 = vsel %vm531, %v2018, %v2116
        %v2171 = vsel %vm533, %v2170, %v2120
        %v2172 = vsel %vm535, %v2171, %v2124
        %v2173 = vsel %vm537, %v2172, %v2128
        %v2174 = vsel %vm539, %v2173, %v2132
        %v2175 = vsel %vm541, %v2174, %v2136
        %v2176 = vsel %vm543, %v2175, %v2140
        %v2177 = vsel %vm531, %v2086, %v2144
        %v2178 = vsel %vm533, %v2177, %v2148
        %v2179 = vsel %vm535, %v2178, %v2152
        %v2180 = vsel %vm537, %v2179, %v2156
        %v2181 = vsel %vm539, %v2180, %v2160
        %v2182 = vsel %vm541, %v2181, %v2164
        %v2183 = vsel %vm543, %v2182, %v2168
        %2184 = vrot.lane.b32.xlu0 %v1722, 126
        %v2185 = vpop.permute.xlu0 %2184
        %2186 = vrot.lane.b32.xlu0 %v1724, 126
        %v2187 = vpop.permute.xlu0 %2186
        %2188 = vrot.lane.b32.xlu0 %v1727, 126
        %v2189 = vpop.permute.xlu0 %2188
        %2190 = vrot.lane.b32.xlu0 %v1729, 126
        %v2191 = vpop.permute.xlu0 %2190
        %2192 = vrot.lane.b32.xlu0 %v1732, 126
        %v2193 = vpop.permute.xlu0 %2192
        %2194 = vrot.lane.b32.xlu0 %v1734, 126
        %v2195 = vpop.permute.xlu0 %2194
        %2196 = vrot.lane.b32.xlu0 %v1737, 126
        %v2197 = vpop.permute.xlu0 %2196
        %2198 = vrot.lane.b32.xlu0 %v1739, 126
        %v2199 = vpop.permute.xlu0 %2198
        %v2208 = vcombine.low %v2185, %v2193
        %v2209 = vcombine.high %v2185, %v2193
        %v2211 = vunpack.c.l.s4 1983009808
        %v2212 = vunpack.c.0.s8 %v2211
        %v2213 = vlaneseq
        %v2214 = vshrl.u32 %v2213, 7
        %v2215 = vsub.s32 %v2212, %v2214
        %v2216 = vrot.slane %v2208, %v2215
        %v2218 = vunpack.c.l.s4 1983009808
        %v2219 = vunpack.c.0.s8 %v2218
        %v2220 = vlaneseq
        %v2221 = vshrl.u32 %v2220, 7
        %v2222 = vsub.s32 %v2219, %v2221
        %v2223 = vrot.slane %v2209, %v2222
        %v2224 = vcombine.low %v2189, %v2197
        %v2225 = vcombine.high %v2189, %v2197
        %v2227 = vunpack.c.l.s4 1983009808
        %v2228 = vunpack.c.0.s8 %v2227
        %v2229 = vlaneseq
        %v2230 = vshrl.u32 %v2229, 7
        %v2231 = vsub.s32 %v2228, %v2230
        %v2232 = vrot.slane %v2224, %v2231
        %v2234 = vunpack.c.l.s4 1983009808
        %v2235 = vunpack.c.0.s8 %v2234
        %v2236 = vlaneseq
        %v2237 = vshrl.u32 %v2236, 7
        %v2238 = vsub.s32 %v2235, %v2237
        %v2239 = vrot.slane %v2225, %v2238
        %v2240 = vcombine.low %v2216, %v2232
        %v2241 = vcombine.high %v2216, %v2232
        %v2243 = vunpack.c.l.s4 1934713408
        %v2244 = vunpack.c.0.s8 %v2243
        %v2245 = vlaneseq
        %v2246 = vshrl.u32 %v2245, 7
        %v2247 = vsub.s32 %v2244, %v2246
        %v2248 = vrot.slane %v2240, %v2247
        %v2250 = vunpack.c.l.s4 1934713408
        %v2251 = vunpack.c.0.s8 %v2250
        %v2252 = vlaneseq
        %v2253 = vshrl.u32 %v2252, 7
        %v2254 = vsub.s32 %v2251, %v2253
        %v2255 = vrot.slane %v2241, %v2254
        %v2256 = vcombine.low %v2223, %v2239
        %v2257 = vcombine.high %v2223, %v2239
        %v2259 = vunpack.c.l.s4 1934713408
        %v2260 = vunpack.c.0.s8 %v2259
        %v2261 = vlaneseq
        %v2262 = vshrl.u32 %v2261, 7
        %v2263 = vsub.s32 %v2260, %v2262
        %v2264 = vrot.slane %v2256, %v2263
        %v2266 = vunpack.c.l.s4 1934713408
        %v2267 = vunpack.c.0.s8 %v2266
        %v2268 = vlaneseq
        %v2269 = vshrl.u32 %v2268, 7
        %v2270 = vsub.s32 %v2267, %v2269
        %v2271 = vrot.slane %v2257, %v2270
        %v2272 = vcombine.high %v2248, 0.0
        %v2273 = vcombine.high %v2255, 0.0
        %v2274 = vcombine.high %v2264, 0.0
        %v2275 = vcombine.high %v2271, 0.0
        %v2276 = vcombine.low %v2187, %v2195
        %v2277 = vcombine.high %v2187, %v2195
        %v2279 = vunpack.c.l.s4 1983009808
        %v2280 = vunpack.c.0.s8 %v2279
        %v2281 = vlaneseq
        %v2282 = vshrl.u32 %v2281, 7
        %v2283 = vsub.s32 %v2280, %v2282
        %v2284 = vrot.slane %v2276, %v2283
        %v2286 = vunpack.c.l.s4 1983009808
        %v2287 = vunpack.c.0.s8 %v2286
        %v2288 = vlaneseq
        %v2289 = vshrl.u32 %v2288, 7
        %v2290 = vsub.s32 %v2287, %v2289
        %v2291 = vrot.slane %v2277, %v2290
        %v2292 = vcombine.low %v2191, %v2199
        %v2293 = vcombine.high %v2191, %v2199
        %v2295 = vunpack.c.l.s4 1983009808
        %v2296 = vunpack.c.0.s8 %v2295
        %v2297 = vlaneseq
        %v2298 = vshrl.u32 %v2297, 7
        %v2299 = vsub.s32 %v2296, %v2298
        %v2300 = vrot.slane %v2292, %v2299
        %v2302 = vunpack.c.l.s4 1983009808
        %v2303 = vunpack.c.0.s8 %v2302
        %v2304 = vlaneseq
        %v2305 = vshrl.u32 %v2304, 7
        %v2306 = vsub.s32 %v2303, %v2305
        %v2307 = vrot.slane %v2293, %v2306
        %v2308 = vcombine.low %v2284, %v2300
        %v2309 = vcombine.high %v2284, %v2300
        %v2311 = vunpack.c.l.s4 1934713408
        %v2312 = vunpack.c.0.s8 %v2311
        %v2313 = vlaneseq
        %v2314 = vshrl.u32 %v2313, 7
        %v2315 = vsub.s32 %v2312, %v2314
        %v2316 = vrot.slane %v2308, %v2315
        %v2318 = vunpack.c.l.s4 1934713408
        %v2319 = vunpack.c.0.s8 %v2318
        %v2320 = vlaneseq
        %v2321 = vshrl.u32 %v2320, 7
        %v2322 = vsub.s32 %v2319, %v2321
        %v2323 = vrot.slane %v2309, %v2322
        %v2324 = vcombine.low %v2291, %v2307
        %v2325 = vcombine.high %v2291, %v2307
        %v2327 = vunpack.c.l.s4 1934713408
        %v2328 = vunpack.c.0.s8 %v2327
        %v2329 = vlaneseq
        %v2330 = vshrl.u32 %v2329, 7
        %v2331 = vsub.s32 %v2328, %v2330
        %v2332 = vrot.slane %v2324, %v2331
        %v2334 = vunpack.c.l.s4 1934713408
        %v2335 = vunpack.c.0.s8 %v2334
        %v2336 = vlaneseq
        %v2337 = vshrl.u32 %v2336, 7
        %v2338 = vsub.s32 %v2335, %v2337
        %v2339 = vrot.slane %v2325, %v2338
        %v2340 = vcombine.high %v2316, 0.0
        %v2341 = vcombine.high %v2323, 0.0
        %v2342 = vcombine.high %v2332, 0.0
        %v2343 = vcombine.high %v2339, 0.0
        %2345 = vrot.lane.b32.xlu0 %v2272, 16
        %v2346 = vpop.permute.xlu0 %2345
        %2349 = vrot.lane.b32.xlu0 %v2255, 32
        %v2350 = vpop.permute.xlu0 %2349
        %2353 = vrot.lane.b32.xlu0 %v2273, 48
        %v2354 = vpop.permute.xlu0 %2353
        %2357 = vrot.lane.b32.xlu0 %v2264, 64
        %v2358 = vpop.permute.xlu0 %2357
        %2361 = vrot.lane.b32.xlu0 %v2274, 80
        %v2362 = vpop.permute.xlu0 %2361
        %2365 = vrot.lane.b32.xlu0 %v2271, 96
        %v2366 = vpop.permute.xlu0 %2365
        %2369 = vrot.lane.b32.xlu0 %v2275, 112
        %v2370 = vpop.permute.xlu0 %2369
        %2373 = vrot.lane.b32.xlu0 %v2340, 16
        %v2374 = vpop.permute.xlu0 %2373
        %2377 = vrot.lane.b32.xlu0 %v2323, 32
        %v2378 = vpop.permute.xlu0 %2377
        %2381 = vrot.lane.b32.xlu0 %v2341, 48
        %v2382 = vpop.permute.xlu0 %2381
        %2385 = vrot.lane.b32.xlu0 %v2332, 64
        %v2386 = vpop.permute.xlu0 %2385
        %2389 = vrot.lane.b32.xlu0 %v2342, 80
        %v2390 = vpop.permute.xlu0 %2389
        %2393 = vrot.lane.b32.xlu0 %v2339, 96
        %v2394 = vpop.permute.xlu0 %2393
        %2397 = vrot.lane.b32.xlu0 %v2343, 112
        %v2398 = vpop.permute.xlu0 %2397
        %v2400 = vsel %vm531, %v2248, %v2346
        %v2401 = vsel %vm533, %v2400, %v2350
        %v2402 = vsel %vm535, %v2401, %v2354
        %v2403 = vsel %vm537, %v2402, %v2358
        %v2404 = vsel %vm539, %v2403, %v2362
        %v2405 = vsel %vm541, %v2404, %v2366
        %v2406 = vsel %vm543, %v2405, %v2370
        %v2407 = vsel %vm531, %v2316, %v2374
        %v2408 = vsel %vm533, %v2407, %v2378
        %v2409 = vsel %vm535, %v2408, %v2382
        %v2410 = vsel %vm537, %v2409, %v2386
        %v2411 = vsel %vm539, %v2410, %v2390
        %v2412 = vsel %vm541, %v2411, %v2394
        %v2413 = vsel %vm543, %v2412, %v2398
        %v2416 = vrot.slane %v782, 4
        %v2417 = vrot.slane %v789, 4
        %v2422 = vrot.slane %v1251, 4
        %v2423 = vrot.slane %v1258, 4
        %v2428 = vrot.slane %v1711, 4
        %v2429 = vrot.slane %v1718, 4
        %v2434 = vrot.slane %v2176, 4
        %v2435 = vrot.slane %v2183, 4
        %vm2438 = vcmask 1043456
        %v2439 = vsel %vm2438, %v544, %v2416
        %v2440 = vsel %vm2438, %v551, %v2417
        %v2441 = vsel %vm2438, %v1012, %v2422
        %v2442 = vsel %vm2438, %v1019, %v2423
        %v2443 = vsel %vm2438, %v1481, %v2428
        %v2444 = vsel %vm2438, %v1488, %v2429
        %v2445 = vsel %vm2438, %v1946, %v2434
        %v2446 = vsel %vm2438, %v1953, %v2435
        %v2447 = vld [vmem:[%s1] sm:$0xff]
        %vm2448 = vcmask 293888
        %v2450 = vsel %vm2448, %v2447, 0
        %v2453 = vsel %vm2438, %v2406, 0
        %v2456 = vsel %vm2438, %v2413, 0
        %2458 = vmatprep.subr.mxu0 %v2440
        %2459 = vmatpush1.msra.mxu0 %v2439
        %2460 = vmatprep.subr.mxu0 %v2442
        %2461 = vmatpush1.msra.mxu0 %v2441
        %2462 = vmatprep.subr.mxu0 %v2444
        %2463 = vmatpush1.msra.mxu0 %v2443
        %2464 = vmatprep.subr.mxu0 %v2446
        %2465 = vmatpush1.msra.mxu0 %v2445
        %2466 = vmatprep.subr.mxu0 %v2456
        %2467 = vmatpush1.msra.mxu0 %v2453
        %2468 = vmatprep.subr.mxu0 0.0
        %2469 = vmatpush1.msra.mxu0 0.0
        %2470 = vmatprep.subr.mxu0 0.0
        %2471 = vmatpush1.msra.mxu0 0.0
        %2472 = vmatprep.subr.mxu0 0.0
        %2473 = vmatpush1.msra.mxu0 0.0
        %2474 = vmatprep.subr.mxu0 0.0
        %2475 = vmatpush1.msra.mxu0 0.0
        %2476 = vmatprep.subr.mxu0 0.0
        %2477 = vmatpush1.msra.mxu0 0.0
        %2478 = vmatprep.subr.mxu0 0.0
        %2479 = vmatpush1.msra.mxu0 0.0
        %2480 = vmatprep.subr.mxu0 0.0
        %2481 = vmatpush1.msra.mxu0 0.0
        %2482 = vmatprep.subr.mxu0 0.0
        %2483 = vmatpush1.msra.mxu0 0.0
        %2484 = vmatprep.subr.mxu0 0.0
        %2485 = vmatpush1.msra.mxu0 0.0
        %2486 = vmatprep.subr.mxu0 0.0
        %2487 = vmatpush1.msra.mxu0 0.0
        %2488 = vmatprep.subr.mxu0 0.0
        %2489 = vmatpush1.msra.mxu0 0.0
        %2490 = vmatprep.subr.mxu0 0.0
        %2491 = vmatpush1.msra.mxu0 0.0
        %2492 = vmatprep.subr.mxu0 0.0
        %2493 = vmatpush1.msra.mxu0 0.0
        %2494 = vmatprep.subr.mxu0 0.0
        %2495 = vmatpush1.msra.mxu0 0.0
        %2496 = vmatprep.subr.mxu0 0.0
        %2497 = vmatpush1.msra.mxu0 0.0
        %2498 = vmatprep.subr.mxu0 0.0
        %2499 = vmatpush1.msra.mxu0 0.0
        %2500 = vmatprep.subr.mxu0 0.0
        %2501 = vmatpush1.msra.mxu0 0.0
        %2502 = vmatprep.subr.mxu0 0.0
        %2503 = vmatpush1.msra.mxu0 0.0
        %2504 = vmatprep.subr.mxu0 0.0
        %2505 = vmatpush1.msra.mxu0 0.0
        %2506 = vmatprep.subr.mxu0 0.0
        %2507 = vmatpush1.msra.mxu0 0.0
        %2508 = vmatprep.subr.mxu0 0.0
        %2509 = vmatpush1.msra.mxu0 0.0
        %2510 = vmatprep.subr.mxu0 0.0
        %2511 = vmatpush1.msra.mxu0 0.0
        %2512 = vmatprep.subr.mxu0 0.0
        %2513 = vmatpush1.msra.mxu0 0.0
        %2514 = vmatprep.subr.mxu0 0.0
        %2515 = vmatpush1.msra.mxu0 0.0
        %2516 = vmatprep.subr.mxu0 0.0
        %2517 = vmatpush1.msra.mxu0 0.0
        %2518 = vmatprep.subr.mxu0 0.0
        %2519 = vmatpush1.msra.mxu0 0.0
        %2520 = vmatprep.subr.mxu0 0.0
        %2521 = vmatpush1.msra.mxu0 0.0
        %2522 = vmatprep.mubr.f32.mxu0 0.0
        %2523 = vmatmul.mubr.f32.gmra.mrb[0].mxu0 %v2450
        %v2524 = vpop.f32.mrb[0].mxu0
        %v2525 = vadd.f32 0.0, %v2524
        %v2526 = vpop.f32.mrb[0].mxu0
        %v2527 = vadd.f32 0.0, %v2526
        %2528 = vdwg.mxu0
        %v2529 = vmax.f32 %v2525, 0.0
        %v2530 = vmax.f32 %v2527, 0.0
        %v2531 = vcombine.low %v216, %v220
        %v2532 = vcombine.high %v216, %v220
        %v2534 = vunpack.c.l.s4 1983009808
        %v2535 = vunpack.c.0.s8 %v2534
        %v2536 = vlaneseq
        %v2537 = vshrl.u32 %v2536, 7
        %v2538 = vsub.s32 %v2535, %v2537
        %v2539 = vrot.slane %v2531, %v2538
        %v2541 = vunpack.c.l.s4 1983009808
        %v2542 = vunpack.c.0.s8 %v2541
        %v2543 = vlaneseq
        %v2544 = vshrl.u32 %v2543, 7
        %v2545 = vsub.s32 %v2542, %v2544
        %v2546 = vrot.slane %v2532, %v2545
        %v2547 = vcombine.low %v218, %v222
        %v2548 = vcombine.high %v218, %v222
        %v2550 = vunpack.c.l.s4 1983009808
        %v2551 = vunpack.c.0.s8 %v2550
        %v2552 = vlaneseq
        %v2553 = vshrl.u32 %v2552, 7
        %v2554 = vsub.s32 %v2551, %v2553
        %v2555 = vrot.slane %v2547, %v2554
        %v2557 = vunpack.c.l.s4 1983009808
        %v2558 = vunpack.c.0.s8 %v2557
        %v2559 = vlaneseq
        %v2560 = vshrl.u32 %v2559, 7
        %v2561 = vsub.s32 %v2558, %v2560
        %v2562 = vrot.slane %v2548, %v2561
        %v2563 = vcombine.low %v2539, %v2555
        %v2564 = vcombine.high %v2539, %v2555
        %v2566 = vunpack.c.l.s4 1934713408
        %v2567 = vunpack.c.0.s8 %v2566
        %v2568 = vlaneseq
        %v2569 = vshrl.u32 %v2568, 7
        %v2570 = vsub.s32 %v2567, %v2569
        %v2571 = vrot.slane %v2563, %v2570
        %v2573 = vunpack.c.l.s4 1934713408
        %v2574 = vunpack.c.0.s8 %v2573
        %v2575 = vlaneseq
        %v2576 = vshrl.u32 %v2575, 7
        %v2577 = vsub.s32 %v2574, %v2576
        %v2578 = vrot.slane %v2564, %v2577
        %v2579 = vcombine.low %v2546, %v2562
        %v2580 = vcombine.high %v2546, %v2562
        %v2582 = vunpack.c.l.s4 1934713408
        %v2583 = vunpack.c.0.s8 %v2582
        %v2584 = vlaneseq
        %v2585 = vshrl.u32 %v2584, 7
        %v2586 = vsub.s32 %v2583, %v2585
        %v2587 = vrot.slane %v2579, %v2586
        %v2589 = vunpack.c.l.s4 1934713408
        %v2590 = vunpack.c.0.s8 %v2589
        %v2591 = vlaneseq
        %v2592 = vshrl.u32 %v2591, 7
        %v2593 = vsub.s32 %v2590, %v2592
        %v2594 = vrot.slane %v2580, %v2593
        %v2595 = vcombine.high %v2571, 0.0
        %v2596 = vcombine.high %v2578, 0.0
        %v2597 = vcombine.high %v2587, 0.0
        %v2598 = vcombine.high %v2594, 0.0
        %v2599 = vcombine.low %v217, %v221
        %v2600 = vcombine.high %v217, %v221
        %v2602 = vunpack.c.l.s4 1983009808
        %v2603 = vunpack.c.0.s8 %v2602
        %v2604 = vlaneseq
        %v2605 = vshrl.u32 %v2604, 7
        %v2606 = vsub.s32 %v2603, %v2605
        %v2607 = vrot.slane %v2599, %v2606
        %v2609 = vunpack.c.l.s4 1983009808
        %v2610 = vunpack.c.0.s8 %v2609
        %v2611 = vlaneseq
        %v2612 = vshrl.u32 %v2611, 7
        %v2613 = vsub.s32 %v2610, %v2612
        %v2614 = vrot.slane %v2600, %v2613
        %v2615 = vcombine.low %v219, %v223
        %v2616 = vcombine.high %v219, %v223
        %v2618 = vunpack.c.l.s4 1983009808
        %v2619 = vunpack.c.0.s8 %v2618
        %v2620 = vlaneseq
        %v2621 = vshrl.u32 %v2620, 7
        %v2622 = vsub.s32 %v2619, %v2621
        %v2623 = vrot.slane %v2615, %v2622
        %v2625 = vunpack.c.l.s4 1983009808
        %v2626 = vunpack.c.0.s8 %v2625
        %v2627 = vlaneseq
        %v2628 = vshrl.u32 %v2627, 7
        %v2629 = vsub.s32 %v2626, %v2628
        %v2630 = vrot.slane %v2616, %v2629
        %v2631 = vcombine.low %v2607, %v2623
        %v2632 = vcombine.high %v2607, %v2623
        %v2634 = vunpack.c.l.s4 1934713408
        %v2635 = vunpack.c.0.s8 %v2634
        %v2636 = vlaneseq
        %v2637 = vshrl.u32 %v2636, 7
        %v2638 = vsub.s32 %v2635, %v2637
        %v2639 = vrot.slane %v2631, %v2638
        %v2641 = vunpack.c.l.s4 1934713408
        %v2642 = vunpack.c.0.s8 %v2641
        %v2643 = vlaneseq
        %v2644 = vshrl.u32 %v2643, 7
        %v2645 = vsub.s32 %v2642, %v2644
        %v2646 = vrot.slane %v2632, %v2645
        %v2647 = vcombine.low %v2614, %v2630
        %v2648 = vcombine.high %v2614, %v2630
        %v2650 = vunpack.c.l.s4 1934713408
        %v2651 = vunpack.c.0.s8 %v2650
        %v2652 = vlaneseq
        %v2653 = vshrl.u32 %v2652, 7
        %v2654 = vsub.s32 %v2651, %v2653
        %v2655 = vrot.slane %v2647, %v2654
        %v2657 = vunpack.c.l.s4 1934713408
        %v2658 = vunpack.c.0.s8 %v2657
        %v2659 = vlaneseq
        %v2660 = vshrl.u32 %v2659, 7
        %v2661 = vsub.s32 %v2658, %v2660
        %v2662 = vrot.slane %v2648, %v2661
        %v2663 = vcombine.high %v2639, 0.0
        %v2664 = vcombine.high %v2646, 0.0
        %v2665 = vcombine.high %v2655, 0.0
        %v2666 = vcombine.high %v2662, 0.0
        %2668 = vrot.lane.b32.xlu0 %v2595, 16
        %v2669 = vpop.permute.xlu0 %2668
        %2672 = vrot.lane.b32.xlu0 %v2578, 32
        %v2673 = vpop.permute.xlu0 %2672
        %2676 = vrot.lane.b32.xlu0 %v2596, 48
        %v2677 = vpop.permute.xlu0 %2676
        %2680 = vrot.lane.b32.xlu0 %v2587, 64
        %v2681 = vpop.permute.xlu0 %2680
        %2684 = vrot.lane.b32.xlu0 %v2597, 80
        %v2685 = vpop.permute.xlu0 %2684
        %2688 = vrot.lane.b32.xlu0 %v2594, 96
        %v2689 = vpop.permute.xlu0 %2688
        %2692 = vrot.lane.b32.xlu0 %v2598, 112
        %v2693 = vpop.permute.xlu0 %2692
        %2696 = vrot.lane.b32.xlu0 %v2663, 16
        %v2697 = vpop.permute.xlu0 %2696
        %2700 = vrot.lane.b32.xlu0 %v2646, 32
        %v2701 = vpop.permute.xlu0 %2700
        %2704 = vrot.lane.b32.xlu0 %v2664, 48
        %v2705 = vpop.permute.xlu0 %2704
        %2708 = vrot.lane.b32.xlu0 %v2655, 64
        %v2709 = vpop.permute.xlu0 %2708
        %2712 = vrot.lane.b32.xlu0 %v2665, 80
        %v2713 = vpop.permute.xlu0 %2712
        %2716 = vrot.lane.b32.xlu0 %v2662, 96
        %v2717 = vpop.permute.xlu0 %2716
        %2720 = vrot.lane.b32.xlu0 %v2666, 112
        %v2721 = vpop.permute.xlu0 %2720
        %v2723 = vsel %vm531, %v2571, %v2669
        %v2724 = vsel %vm533, %v2723, %v2673
        %v2725 = vsel %vm535, %v2724, %v2677
        %v2726 = vsel %vm537, %v2725, %v2681
        %v2727 = vsel %vm539, %v2726, %v2685
        %v2728 = vsel %vm541, %v2727, %v2689
        %v2729 = vsel %vm543, %v2728, %v2693
        %v2730 = vsel %vm531, %v2639, %v2697
        %v2731 = vsel %vm533, %v2730, %v2701
        %v2732 = vsel %vm535, %v2731, %v2705
        %v2733 = vsel %vm537, %v2732, %v2709
        %v2734 = vsel %vm539, %v2733, %v2713
        %v2735 = vsel %vm541, %v2734, %v2717
        %v2736 = vsel %vm543, %v2735, %v2721
        %v2737 = vld [vmem:[%s2] sm:$0xff]
        %v2738 = vld [vmem:[%s3] sm:$0xff]
        %2740 = vset.pattern.permute.xlu0 0
        %2741 = vperm.xlu0 %2740, %v2738
        %v2742 = vpop.permute.xlu0 %2741
        %vm2744 = vcmask 97280
        %v2746 = vsel %vm2744, %v2737, 0
        %v2749 = vsel %vm2438, %v2729, 0
        %v2752 = vsel %vm2438, %v2736, 0
        %2754 = vmatprep.subr.mxu0 %v2530
        %2755 = vmatpush1.msra.mxu0 %v2529
        %2756 = vmatprep.subr.mxu0 %v2752
        %2757 = vmatpush1.msra.mxu0 %v2749
        %2758 = vmatprep.subr.mxu0 0.0
        %2759 = vmatpush1.msra.mxu0 0.0
        %2760 = vmatprep.subr.mxu0 0.0
        %2761 = vmatpush1.msra.mxu0 0.0
        %2762 = vmatprep.subr.mxu0 0.0
        %2763 = vmatpush1.msra.mxu0 0.0
        %2764 = vmatprep.subr.mxu0 0.0
        %2765 = vmatpush1.msra.mxu0 0.0
        %2766 = vmatprep.subr.mxu0 0.0
        %2767 = vmatpush1.msra.mxu0 0.0
        %2768 = vmatprep.subr.mxu0 0.0
        %2769 = vmatpush1.msra.mxu0 0.0
        %2770 = vmatprep.subr.mxu0 0.0
        %2771 = vmatpush1.msra.mxu0 0.0
        %2772 = vmatprep.subr.mxu0 0.0
        %2773 = vmatpush1.msra.mxu0 0.0
        %2774 = vmatprep.subr.mxu0 0.0
        %2775 = vmatpush1.msra.mxu0 0.0
        %2776 = vmatprep.subr.mxu0 0.0
        %2777 = vmatpush1.msra.mxu0 0.0
        %2778 = vmatprep.subr.mxu0 0.0
        %2779 = vmatpush1.msra.mxu0 0.0
        %2780 = vmatprep.subr.mxu0 0.0
        %2781 = vmatpush1.msra.mxu0 0.0
        %2782 = vmatprep.subr.mxu0 0.0
        %2783 = vmatpush1.msra.mxu0 0.0
        %2784 = vmatprep.subr.mxu0 0.0
        %2785 = vmatpush1.msra.mxu0 0.0
        %2786 = vmatprep.subr.mxu0 0.0
        %2787 = vmatpush1.msra.mxu0 0.0
        %2788 = vmatprep.subr.mxu0 0.0
        %2789 = vmatpush1.msra.mxu0 0.0
        %2790 = vmatprep.subr.mxu0 0.0
        %2791 = vmatpush1.msra.mxu0 0.0
        %2792 = vmatprep.subr.mxu0 0.0
        %2793 = vmatpush1.msra.mxu0 0.0
        %2794 = vmatprep.subr.mxu0 0.0
        %2795 = vmatpush1.msra.mxu0 0.0
        %2796 = vmatprep.subr.mxu0 0.0
        %2797 = vmatpush1.msra.mxu0 0.0
        %2798 = vmatprep.subr.mxu0 0.0
        %2799 = vmatpush1.msra.mxu0 0.0
        %2800 = vmatprep.subr.mxu0 0.0
        %2801 = vmatpush1.msra.mxu0 0.0
        %2802 = vmatprep.subr.mxu0 0.0
        %2803 = vmatpush1.msra.mxu0 0.0
        %2804 = vmatprep.subr.mxu0 0.0
        %2805 = vmatpush1.msra.mxu0 0.0
        %2806 = vmatprep.subr.mxu0 0.0
        %2807 = vmatpush1.msra.mxu0 0.0
        %2808 = vmatprep.subr.mxu0 0.0
        %2809 = vmatpush1.msra.mxu0 0.0
        %2810 = vmatprep.subr.mxu0 0.0
        %2811 = vmatpush1.msra.mxu0 0.0
        %2812 = vmatprep.subr.mxu0 0.0
        %2813 = vmatpush1.msra.mxu0 0.0
        %2814 = vmatprep.subr.mxu0 0.0
        %2815 = vmatpush1.msra.mxu0 0.0
        %2816 = vmatprep.subr.mxu0 0.0
        %2817 = vmatpush1.msra.mxu0 0.0
        %2818 = vmatprep.mubr.f32.mxu0 0.0
        %2819 = vmatmul.mubr.f32.gmra.mrb[0].mxu0 %v2746
        %v2820 = vpop.f32.mrb[0].mxu0
        %v2821 = vadd.f32 %v2742, %v2820
        %v2822 = vpop.f32.mrb[0].mxu0
        %v2823 = vadd.f32 %v2742, %v2822
        %2824 = vdwg.mxu0
        %2825 = vst [vmem:[%s215] sm:$0xff] %v2821
        %2826 = vst [vmem:[%s215 + $0x8] sm:$0xff] %v2823
        %s2827 = sand.u32 %s118, 1
        %s2828 = scalar_lea.sflag [#allocation4], %s2827
        %s2829 = sand.u32 %s118, 1
        %s2830 = smul.addr %s2829, 16
        %s2831 = scalar_lea.vmem [#allocation5], %s2830
        // Predicated region
        $region41: #{tpu_custom_call.1} parent=35 // pred_check
          %p2832 = pneg %p128
        $region42: #{tpu_custom_call.1} parent=35 // pred_check_branch
          %2834 = sbr.rel (%p2832) target = $region44
        $region43: #{tpu_custom_call.1} parent=35 // pred_region
          %s2836 = ssub.s32 256, 256
          %2837 = vsyncadd %s2828, %s2836
          %s2838 = smul.addr %s21, 2
          %s2839 = smul.addr %s2838, 128
          %s2840 = scalar_lea.hbm %s4, %s2839
          %s2842 = sshll.u32 %s2831, 4
          %s2843 = int_to_ptr.vmem [resolvable:$true] %s2842
          %2845 = dma.vmem_to_hbm [thread:$0]  %s2843, 256, %s2840, %s2828
        $region44: #{tpu_custom_call.1} parent=35 // pred_fallthru
          _
      $region36: #{tpu_custom_call.1} parent=5 // pred_fallthru
        _
      %p2846 = scmp.le.s32.totalorder 2, %s16
      // Predicated region
      $region45: #{tpu_custom_call.1} parent=5 // pred_check
        %p2847 = pneg %p2846
      $region46: #{tpu_custom_call.1} parent=5 // pred_check_branch
        %2849 = sbr.rel (%p2847) target = $region48
      $region47: #{tpu_custom_call.1} parent=5 // pred_region
        %s2850 = ssub.s32 %s16, 2
        // Predicated region
        $region49: #{tpu_custom_call.1} parent=47 // pred_check
          %p2851 = pneg %p134
        $region50: #{tpu_custom_call.1} parent=47 // pred_check_branch
          %2853 = sbr.rel (%p2851) target = $region52
        $region51: #{tpu_custom_call.1} parent=47 // pred_region
          %s2854 = sand.u32 %s119, 1
          %s2855 = scalar_lea.sflag [#allocation4], %s2854
          %s2856 = sand.u32 %s119, 1
          %s2857 = smul.addr %s2856, 16
          %s2858 = scalar_lea.vmem [#allocation5], %s2857
          %2859 = dma.done %s2855, 256
        $region52: #{tpu_custom_call.1} parent=47 // pred_fallthru
          _
      $region48: #{tpu_custom_call.1} parent=5 // pred_fallthru
        _
    $region6: #{tpu_custom_call.1} parent=1 // loop_footer
      %s20 = sadd.s32 1, %s16
    $region7: #{tpu_custom_call.1} parent=1 // loop_footer_branch
      %15 = sbr.rel target = $region3
    $region8: #{tpu_custom_call.1} parent=1 // loop_exit
      _
    %2860 = vsyncpa [#allocation3], 1
    %s2861 = scalar_lea.sflag [#allocation3], 1
    %2862 = vsyncpa %s2861, 1
    %2863 = vsyncpa [#allocation4], 1
    %s2864 = scalar_lea.sflag [#allocation4], 1
    %2865 = vsyncpa %s2864, 1

</llo_original>
